<compile_context>
chip_gen: v6e
topology: v6e:2x2x1
jax: 0.10.0
libtpu: 0.0.40
codegen_flags: <defaults>
</compile_context>

<pallas_src>
import functools

import jax
import jax.numpy as jnp
from jax import lax
from jax.experimental import pallas as pl
from jax.experimental.pallas import tpu as pltpu


# ----------------------------------------------------------------------------
# In-kernel GroupNorm (PyTorch semantics: biased variance, eps) on a (C, S) f32 tile,
# channels on sublanes, spatial on lanes.  One-pass stats; group reduce/broadcast via
# tiny constant one-hot matmuls (passed in, not rebuilt per grid step).
# ----------------------------------------------------------------------------
def _group_norm_cs(y, m_gc, m_cg, gamma, beta, eps):
    C, S = y.shape
    G = m_gc.shape[0]
    cnt = jnp.float32(S * (C // G))
    s_c = jnp.sum(y, axis=1, keepdims=True)                               # (C, 1)
    q_c = jnp.sum(y * y, axis=1, keepdims=True)                           # (C, 1)
    s_g = jnp.dot(m_gc, s_c, preferred_element_type=jnp.float32)          # (G, 1)
    q_g = jnp.dot(m_gc, q_c, preferred_element_type=jnp.float32)          # (G, 1)
    mean_g = s_g / cnt
    var_g = q_g / cnt - mean_g * mean_g                                   # biased, f32
    inv_g = lax.rsqrt(var_g + eps)
    mean_c = jnp.dot(m_cg, mean_g, preferred_element_type=jnp.float32)    # (C, 1)
    inv_c = jnp.dot(m_cg, inv_g, preferred_element_type=jnp.float32)      # (C, 1)
    scale = inv_c * gamma                                                 # (C, 1)
    shift = beta - mean_c * scale
    return y * scale + shift


# ----------------------------------------------------------------------------
# Kernel A (low-res branch): a = W2a^T @ relu(GN1(W1^T @ x_lo)), fully fused in VMEM.
# All operands in (C, S) layout; matmuls accumulate in f32.
# ----------------------------------------------------------------------------
def _lo_branch_kernel(x_ref, w1t_ref, w2at_ref, g_ref, b_ref, mgc_ref, mcg_ref,
                      o_ref, *, eps):
    x = x_ref[0]                                                          # (C_lo, S_lo)
    y = jnp.dot(w1t_ref[...], x, preferred_element_type=jnp.float32)      # 1x1 conv (up)
    y = _group_norm_cs(y, mgc_ref[...], mcg_ref[...], g_ref[...], b_ref[...], eps)
    y = jnp.maximum(y, 0.0)                                               # ReLU
    a = jnp.dot(w2at_ref[...], y.astype(w2at_ref.dtype),
                preferred_element_type=jnp.float32)                       # W2a half of conv2
    o_ref[0] = a.astype(o_ref.dtype)


# ----------------------------------------------------------------------------
# Kernel B (hi-res branch): out = GN2(a_up + W2b^T @ x_hi), fully fused in VMEM.
# Output store is lane-dense: (C_out, S_hi) with S_hi on the 128-lane axis.
# ----------------------------------------------------------------------------
def _hi_branch_kernel(aup_ref, xhi_ref, w2bt_ref, g_ref, b_ref, mgc_ref, mcg_ref,
                      o_ref, *, eps):
    z = jnp.dot(w2bt_ref[...], xhi_ref[0], preferred_element_type=jnp.float32)
    z = z + aup_ref[0].astype(jnp.float32)
    z = _group_norm_cs(z, mgc_ref[...], mcg_ref[...], g_ref[...], b_ref[...], eps)
    o_ref[0] = z.astype(o_ref.dtype)


def _group_onehots(c, groups):
    cid = jnp.arange(c, dtype=jnp.int32) // (c // groups)
    m_cg = (cid[:, None] == jnp.arange(groups, dtype=jnp.int32)[None, :]).astype(jnp.float32)
    return m_cg.T, m_cg                                                   # (G, C), (C, G)


# ----------------------------------------------------------------------------
# Forward pass (public interface is PyTorch-style NCHW; no transposes needed).
# ----------------------------------------------------------------------------
def combine_layers_forward(params, norm_groups, layer_lo, layer_hi,
                           io_dtype=jnp.bfloat16):
    """layer_lo: (N, C, H, W), layer_hi: (N, C_hi, 2H, 2W) -> (N, C, 2H, 2W)."""
    N, c_lo, H, W = layer_lo.shape
    _, c_hi, H2, W2 = layer_hi.shape
    eps = 1e-5

    w1 = params['up']['w']                           # (C_lo, C_mid)
    w2 = params['combine']['w']                      # (C_mid + C_hi, C_out)
    c_mid = w1.shape[1]
    c_out = w2.shape[1]
    G = norm_groups

    # Pre-transposed weights (tiny) so the kernels compute W^T @ X in (C, S) layout.
    w1t = jnp.transpose(w1).astype(io_dtype)         # (C_mid, C_lo)
    w2at = jnp.transpose(w2[:c_mid]).astype(io_dtype)   # (C_out, C_mid)
    w2bt = jnp.transpose(w2[c_mid:]).astype(io_dtype)   # (C_out, C_hi)
    g1 = params['up']['gamma'].reshape(c_mid, 1).astype(jnp.float32)
    b1 = params['up']['beta'].reshape(c_mid, 1).astype(jnp.float32)
    g2 = params['combine']['gamma'].reshape(c_out, 1).astype(jnp.float32)
    b2 = params['combine']['beta'].reshape(c_out, 1).astype(jnp.float32)
    mgc1, mcg1 = _group_onehots(c_mid, G)
    mgc2, mcg2 = _group_onehots(c_out, G)

    s_lo, s_hi = H * W, H2 * W2
    # Pure views of the NCHW inputs — no transpose, no extra HBM pass.
    x_lo = layer_lo.reshape(N, c_lo, s_lo).astype(io_dtype)
    x_hi = layer_hi.reshape(N, c_hi, s_hi).astype(io_dtype)

    cp = pltpu.CompilerParams(
        dimension_semantics=("parallel",),
        vmem_limit_bytes=48 * 1024 * 1024,
    )

    # --- low-res branch: conv1 + GN1 + ReLU + (W2a half of conv2), one kernel ---------
    a = pl.pallas_call(
        functools.partial(_lo_branch_kernel, eps=eps),
        out_shape=jax.ShapeDtypeStruct((N, c_out, s_lo), io_dtype),
        grid=(N,),
        in_specs=[
            pl.BlockSpec((1, c_lo, s_lo), lambda n: (n, 0, 0)),
            pl.BlockSpec((c_mid, c_lo), lambda n: (0, 0)),
            pl.BlockSpec((c_out, c_mid), lambda n: (0, 0)),
            pl.BlockSpec((c_mid, 1), lambda n: (0, 0)),
            pl.BlockSpec((c_mid, 1), lambda n: (0, 0)),
            pl.BlockSpec((G, c_mid), lambda n: (0, 0)),
            pl.BlockSpec((c_mid, G), lambda n: (0, 0)),
        ],
        out_specs=pl.BlockSpec((1, c_out, s_lo), lambda n: (n, 0, 0)),
        compiler_params=cp,
    )(x_lo, w1t, w2at, g1, b1, mgc1, mcg1)

    # Nearest-2x upsample of the small bf16 partial result, in NCHW-flat order
    # ((N, C, H*W) -> (N, C, 2H*2W)).  TODO(synk): fuse into kernel B (lane interleave).
    a_up = jnp.broadcast_to(a.reshape(N, c_out, H, 1, W, 1),
                            (N, c_out, H, 2, W, 2)).reshape(N, c_out, s_hi)

    # --- hi-res branch: (W2b half of conv2) + add + GN2, one kernel --------------------
    out = pl.pallas_call(
        functools.partial(_hi_branch_kernel, eps=eps),
        out_shape=jax.ShapeDtypeStruct((N, c_out, s_hi), io_dtype),
        grid=(N,),
        in_specs=[
            pl.BlockSpec((1, c_out, s_hi), lambda n: (n, 0, 0)),
            pl.BlockSpec((1, c_hi, s_hi), lambda n: (n, 0, 0)),
            pl.BlockSpec((c_out, c_hi), lambda n: (0, 0)),
            pl.BlockSpec((c_out, 1), lambda n: (0, 0)),
            pl.BlockSpec((c_out, 1), lambda n: (0, 0)),
            pl.BlockSpec((G, c_out), lambda n: (0, 0)),
            pl.BlockSpec((c_out, G), lambda n: (0, 0)),
        ],
        out_specs=pl.BlockSpec((1, c_out, s_hi), lambda n: (n, 0, 0)),
        compiler_params=cp,
    )(a_up, x_hi, w2bt, g2, b2, mgc2, mcg2)

    # Pure view back to NCHW — no transpose.
    return out.reshape(N, c_out, H2, W2)


# ----------------------------------------------------------------------------
# Literal (un-fused) reference of the PyTorch forward, for self-checking.
# ----------------------------------------------------------------------------
def _reference_forward(params, groups, layer_lo, layer_hi, eps=1e-5):
    def conv1x1(x, w):                               # x NCHW, w (Cin, Cout)
        return jnp.einsum('nchw,cd->ndhw', x, w)

    def gn(x, gamma, beta):
        N, C, H, W = x.shape
        xg = x.reshape(N, groups, C // groups, H, W)
        m = xg.mean(axis=(2, 3, 4), keepdims=True)
        v = ((xg - m) ** 2).mean(axis=(2, 3, 4), keepdims=True)
        xn = ((xg - m) / jnp.sqrt(v + eps)).reshape(N, C, H, W)
        return xn * gamma.reshape(1, C, 1, 1) + beta.reshape(1, C, 1, 1)

    up = jnp.repeat(jnp.repeat(layer_lo, 2, axis=2), 2, axis=3)      # nearest 2x
    up = gn(conv1x1(up, params['up']['w']),
            params['up']['gamma'], params['up']['beta'])
    up = jnp.maximum(up, 0.0)
    x = jnp.concatenate([up, layer_hi], axis=1)
    return gn(conv1x1(x, params['combine']['w']),
              params['combine']['gamma'], params['combine']['beta'])


# ----------------------------------------------------------------------------
# Deterministic parameter init (1x1 convs, bias=False, GroupNorm affine).
# ----------------------------------------------------------------------------
def init_params(key, nfilters, c_hi):
    c_mid = nfilters // 2
    keys = jax.random.split(key, 6)
    s1 = 1.0 / jnp.sqrt(jnp.float32(nfilters))
    s2 = 1.0 / jnp.sqrt(jnp.float32(c_mid + c_hi))
    return {
        'up': {
            'w': jax.random.uniform(keys[0], (nfilters, c_mid), jnp.float32, -s1, s1),
            'gamma': 1.0 + 0.1 * jax.random.normal(keys[1], (c_mid,), jnp.float32),
            'beta': 0.1 * jax.random.normal(keys[2], (c_mid,), jnp.float32),
        },
        'combine': {
            'w': jax.random.uniform(keys[3], (c_mid + c_hi, nfilters), jnp.float32, -s2, s2),
            'gamma': 1.0 + 0.1 * jax.random.normal(keys[4], (nfilters,), jnp.float32),
            'beta': 0.1 * jax.random.normal(keys[5], (nfilters,), jnp.float32),
        },
    }


if __name__ == "__main__":
    nfilters, norm_groups = 32, 4
    N, H, W = 2, 8, 8
    c_hi = nfilters // 2                             # skip connection channels

    key = jax.random.PRNGKey(0)
    pkey, klo, khi = jax.random.split(key, 3)
    params = init_params(pkey, nfilters, c_hi)

    layer_lo = jax.random.normal(klo, (N, nfilters, H, W), jnp.float32)
    layer_hi = jax.random.normal(khi, (N, c_hi, 2 * H, 2 * W), jnp.float32)

    fwd = jax.jit(combine_layers_forward, static_argnums=(1, 4))

    # --- primary (optimized) bf16-I/O run -------------------------------------------
    out_bf16 = jax.block_until_ready(
        fwd(params, norm_groups, layer_lo, layer_hi, jnp.bfloat16))
    assert out_bf16.shape == (N, nfilters, 2 * H, 2 * W), out_bf16.shape
    assert bool(jnp.all(jnp.isfinite(out_bf16.astype(jnp.float32))))

    # bf16-consistent reference: quantize exactly what the kernel quantizes (inputs and
    # conv weights); GroupNorm affine params and all statistics stay f32 in both.
    q = lambda a: a.astype(jnp.bfloat16).astype(jnp.float32)
    params_q = {
        'up': {'w': q(params['up']['w']),
               'gamma': params['up']['gamma'], 'beta': params['up']['beta']},
        'combine': {'w': q(params['combine']['w']),
                    'gamma': params['combine']['gamma'], 'beta': params['combine']['beta']},
    }
    ref_q = _reference_forward(params_q, norm_groups, q(layer_lo), q(layer_hi))
    err_bf16 = float(jnp.max(jnp.abs(out_bf16.astype(jnp.float32) - ref_q)))
    # Remaining error is only the kernel's internal bf16 round-trips (y, a, a_up, out).
    assert err_bf16 < 6e-2, err_bf16

    # --- exactness check of the fused math itself: f32-I/O run vs literal reference --
    out_f32 = jax.block_until_ready(
        fwd(params, norm_groups, layer_lo, layer_hi, jnp.float32))
    ref = _reference_forward(params, norm_groups, layer_lo, layer_hi)
    assert bool(jnp.allclose(out_f32, ref, atol=1e-3, rtol=1e-3)), \
        float(jnp.max(jnp.abs(out_f32 - ref)))

    print("KERNEL_OK")
</pallas_src>

<mosaic_0001>
module attributes {stable_mosaic.version = 11 : i64} {
  func.func @_lo_branch_kernel(%arg0: i32, %arg1: memref<1x32x64xbf16, #tpu.memory_space<vmem>>, %arg2: memref<16x32xbf16, #tpu.memory_space<vmem>>, %arg3: memref<32x16xbf16, #tpu.memory_space<vmem>>, %arg4: memref<16x1xf32, #tpu.memory_space<vmem>>, %arg5: memref<16x1xf32, #tpu.memory_space<vmem>>, %arg6: memref<4x16xf32, #tpu.memory_space<vmem>>, %arg7: memref<16x4xf32, #tpu.memory_space<vmem>>, %arg8: memref<1x32x64xbf16, #tpu.memory_space<vmem>>) attributes {dimension_semantics = [#tpu.dimension_semantics<parallel>], iteration_bounds = array<i64: 2>, scalar_prefetch = 0 : i64, scratch_operands = 0 : i64, tpu.core_type = #tpu.core_type<tc>, window_params = [{transform_indices = @transform_0, window_bounds = array<i64: 1, 32, 64>}, {pipeline_mode = #tpu.pipeline_mode<synchronous>, transform_indices = @transform_1, window_bounds = array<i64: 16, 32>}, {pipeline_mode = #tpu.pipeline_mode<synchronous>, transform_indices = @transform_2, window_bounds = array<i64: 32, 16>}, {pipeline_mode = #tpu.pipeline_mode<synchronous>, transform_indices = @transform_3, window_bounds = array<i64: 16, 1>}, {pipeline_mode = #tpu.pipeline_mode<synchronous>, transform_indices = @transform_4, window_bounds = array<i64: 16, 1>}, {pipeline_mode = #tpu.pipeline_mode<synchronous>, transform_indices = @transform_5, window_bounds = array<i64: 4, 16>}, {pipeline_mode = #tpu.pipeline_mode<synchronous>, transform_indices = @transform_6, window_bounds = array<i64: 16, 4>}, {transform_indices = @transform_7, window_bounds = array<i64: 1, 32, 64>}]} {
    %c0 = arith.constant 0 : index
    %c0_0 = arith.constant 0 : index
    %c0_1 = arith.constant 0 : index
    %0 = vector.load %arg1[%c0, %c0_0, %c0_1] : memref<1x32x64xbf16, #tpu.memory_space<vmem>>, vector<1x32x64xbf16>
    %1 = vector.shape_cast %0 : vector<1x32x64xbf16> to vector<32x64xbf16>
    %c0_2 = arith.constant 0 : index
    %c0_3 = arith.constant 0 : index
    %2 = vector.load %arg2[%c0_2, %c0_3] : memref<16x32xbf16, #tpu.memory_space<vmem>>, vector<16x32xbf16>
    %cst = arith.constant dense<0.000000e+00> : vector<16x64xf32>
    %3 = tpu.matmul %2, %1, %cst {dimension_numbers = #tpu.dot_dimension_numbers<[1], [0], [0], [1], [0, 0, 1, 1], [], []>} : vector<16x32xbf16>, vector<32x64xbf16>, vector<16x64xf32> -> vector<16x64xf32>
    %c0_4 = arith.constant 0 : index
    %c0_5 = arith.constant 0 : index
    %4 = vector.load %arg6[%c0_4, %c0_5] : memref<4x16xf32, #tpu.memory_space<vmem>>, vector<4x16xf32>
    %c0_6 = arith.constant 0 : index
    %c0_7 = arith.constant 0 : index
    %5 = vector.load %arg7[%c0_6, %c0_7] : memref<16x4xf32, #tpu.memory_space<vmem>>, vector<16x4xf32>
    %c0_8 = arith.constant 0 : index
    %c0_9 = arith.constant 0 : index
    %6 = vector.load %arg4[%c0_8, %c0_9] : memref<16x1xf32, #tpu.memory_space<vmem>>, vector<16x1xf32>
    %c0_10 = arith.constant 0 : index
    %c0_11 = arith.constant 0 : index
    %7 = vector.load %arg5[%c0_10, %c0_11] : memref<16x1xf32, #tpu.memory_space<vmem>>, vector<16x1xf32>
    %cst_12 = arith.constant dense<0.000000e+00> : vector<16xf32>
    %8 = vector.multi_reduction <add>, %3, %cst_12 [1] : vector<16x64xf32> to vector<16xf32>
    %9 = vector.shape_cast %8 : vector<16xf32> to vector<16x1xf32>
    %10 = arith.mulf %3, %3 : vector<16x64xf32>
    %cst_13 = arith.constant dense<0.000000e+00> : vector<16xf32>
    %11 = vector.multi_reduction <add>, %10, %cst_13 [1] : vector<16x64xf32> to vector<16xf32>
    %12 = vector.shape_cast %11 : vector<16xf32> to vector<16x1xf32>
    %cst_14 = arith.constant dense<0.000000e+00> : vector<4x1xf32>
    %13 = tpu.matmul %4, %9, %cst_14 {dimension_numbers = #tpu.dot_dimension_numbers<[1], [0], [0], [1], [0, 0, 1, 1], [], []>} : vector<4x16xf32>, vector<16x1xf32>, vector<4x1xf32> -> vector<4x1xf32>
    %cst_15 = arith.constant dense<0.000000e+00> : vector<4x1xf32>
    %14 = tpu.matmul %4, %12, %cst_15 {dimension_numbers = #tpu.dot_dimension_numbers<[1], [0], [0], [1], [0, 0, 1, 1], [], []>} : vector<4x16xf32>, vector<16x1xf32>, vector<4x1xf32> -> vector<4x1xf32>
    %cst_16 = arith.constant 2.560000e+02 : f32
    %15 = vector.broadcast %cst_16 : f32 to vector<4x1xf32>
    %16 = arith.divf %13, %15 : vector<4x1xf32>
    %cst_17 = arith.constant 2.560000e+02 : f32
    %17 = vector.broadcast %cst_17 : f32 to vector<4x1xf32>
    %18 = arith.divf %14, %17 : vector<4x1xf32>
    %19 = arith.mulf %16, %16 : vector<4x1xf32>
    %20 = arith.subf %18, %19 : vector<4x1xf32>
    %cst_18 = arith.constant 9.99999974E-6 : f32
    %21 = vector.broadcast %cst_18 : f32 to vector<4x1xf32>
    %22 = arith.addf %20, %21 : vector<4x1xf32>
    %23 = math.rsqrt %22 : vector<4x1xf32>
    %cst_19 = arith.constant dense<0.000000e+00> : vector<16x1xf32>
    %24 = tpu.matmul %5, %16, %cst_19 {dimension_numbers = #tpu.dot_dimension_numbers<[1], [0], [0], [1], [0, 0, 1, 1], [], []>} : vector<16x4xf32>, vector<4x1xf32>, vector<16x1xf32> -> vector<16x1xf32>
    %cst_20 = arith.constant dense<0.000000e+00> : vector<16x1xf32>
    %25 = tpu.matmul %5, %23, %cst_20 {dimension_numbers = #tpu.dot_dimension_numbers<[1], [0], [0], [1], [0, 0, 1, 1], [], []>} : vector<16x4xf32>, vector<4x1xf32>, vector<16x1xf32> -> vector<16x1xf32>
    %26 = arith.mulf %25, %6 : vector<16x1xf32>
    %27 = arith.mulf %24, %26 : vector<16x1xf32>
    %28 = arith.subf %7, %27 : vector<16x1xf32>
    %29 = vector.broadcast %26 : vector<16x1xf32> to vector<16x64xf32>
    %30 = arith.mulf %3, %29 : vector<16x64xf32>
    %31 = vector.broadcast %28 : vector<16x1xf32> to vector<16x64xf32>
    %32 = arith.addf %30, %31 : vector<16x64xf32>
    %cst_21 = arith.constant 0.000000e+00 : f32
    %33 = vector.broadcast %cst_21 : f32 to vector<16x64xf32>
    %34 = arith.maximumf %32, %33 : vector<16x64xf32>
    %c0_22 = arith.constant 0 : index
    %c0_23 = arith.constant 0 : index
    %35 = vector.load %arg3[%c0_22, %c0_23] : memref<32x16xbf16, #tpu.memory_space<vmem>>, vector<32x16xbf16>
    %36 = arith.truncf %34 : vector<16x64xf32> to vector<16x64xbf16>
    %cst_24 = arith.constant dense<0.000000e+00> : vector<32x64xf32>
    %37 = tpu.matmul %35, %36, %cst_24 {dimension_numbers = #tpu.dot_dimension_numbers<[1], [0], [0], [1], [0, 0, 1, 1], [], []>} : vector<32x16xbf16>, vector<16x64xbf16>, vector<32x64xf32> -> vector<32x64xf32>
    %38 = arith.truncf %37 : vector<32x64xf32> to vector<32x64xbf16>
    %c0_25 = arith.constant 0 : index
    %c0_26 = arith.constant 0 : index
    %c0_27 = arith.constant 0 : index
    %39 = vector.load %arg8[%c0_25, %c0_26, %c0_27] : memref<1x32x64xbf16, #tpu.memory_space<vmem>>, vector<1x32x64xbf16>
    %40 = vector.shape_cast %39 : vector<1x32x64xbf16> to vector<32x64xbf16>
    %41 = vector.shape_cast %38 : vector<32x64xbf16> to vector<1x32x64xbf16>
    tpu.vector_store %arg8[%c0_25, %c0_26, %c0_27], %41 {strides = array<i32>} : memref<1x32x64xbf16, #tpu.memory_space<vmem>>, vector<1x32x64xbf16>,
    return
  }
  func.func @transform_0(%arg0: i32) -> (i32, i32, i32) {
    %c0_i32 = arith.constant 0 : i32
    %c0_i32_0 = arith.constant 0 : i32
    %c0_i32_1 = arith.constant 0 : i32
    return %arg0, %c0_i32, %c0_i32_0 : i32, i32, i32
  }
  func.func @transform_1(%arg0: i32) -> (i32, i32) {
    %c0_i32 = arith.constant 0 : i32
    %c0_i32_0 = arith.constant 0 : i32
    %c0_i32_1 = arith.constant 0 : i32
    return %c0_i32, %c0_i32_0 : i32, i32
  }
  func.func @transform_2(%arg0: i32) -> (i32, i32) {
    %c0_i32 = arith.constant 0 : i32
    %c0_i32_0 = arith.constant 0 : i32
    %c0_i32_1 = arith.constant 0 : i32
    return %c0_i32, %c0_i32_0 : i32, i32
  }
  func.func @transform_3(%arg0: i32) -> (i32, i32) {
    %c0_i32 = arith.constant 0 : i32
    %c0_i32_0 = arith.constant 0 : i32
    %c0_i32_1 = arith.constant 0 : i32
    return %c0_i32, %c0_i32_0 : i32, i32
  }
  func.func @transform_4(%arg0: i32) -> (i32, i32) {
    %c0_i32 = arith.constant 0 : i32
    %c0_i32_0 = arith.constant 0 : i32
    %c0_i32_1 = arith.constant 0 : i32
    return %c0_i32, %c0_i32_0 : i32, i32
  }
  func.func @transform_5(%arg0: i32) -> (i32, i32) {
    %c0_i32 = arith.constant 0 : i32
    %c0_i32_0 = arith.constant 0 : i32
    %c0_i32_1 = arith.constant 0 : i32
    return %c0_i32, %c0_i32_0 : i32, i32
  }
  func.func @transform_6(%arg0: i32) -> (i32, i32) {
    %c0_i32 = arith.constant 0 : i32
    %c0_i32_0 = arith.constant 0 : i32
    %c0_i32_1 = arith.constant 0 : i32
    return %c0_i32, %c0_i32_0 : i32, i32
  }
  func.func @transform_7(%arg0: i32) -> (i32, i32, i32) {
    %c0_i32 = arith.constant 0 : i32
    %c0_i32_0 = arith.constant 0 : i32
    %c0_i32_1 = arith.constant 0 : i32
    return %arg0, %c0_i32, %c0_i32_0 : i32, i32, i32
  }
}

module attributes {stable_mosaic.version = 11 : i64} {
  func.func @_hi_branch_kernel(%arg0: i32, %arg1: memref<1x32x256xbf16, #tpu.memory_space<vmem>>, %arg2: memref<1x16x256xbf16, #tpu.memory_space<vmem>>, %arg3: memref<32x16xbf16, #tpu.memory_space<vmem>>, %arg4: memref<32x1xf32, #tpu.memory_space<vmem>>, %arg5: memref<32x1xf32, #tpu.memory_space<vmem>>, %arg6: memref<4x32xf32, #tpu.memory_space<vmem>>, %arg7: memref<32x4xf32, #tpu.memory_space<vmem>>, %arg8: memref<1x32x256xbf16, #tpu.memory_space<vmem>>) attributes {dimension_semantics = [#tpu.dimension_semantics<parallel>], iteration_bounds = array<i64: 2>, scalar_prefetch = 0 : i64, scratch_operands = 0 : i64, tpu.core_type = #tpu.core_type<tc>, window_params = [{transform_indices = @transform_0, window_bounds = array<i64: 1, 32, 256>}, {transform_indices = @transform_1, window_bounds = array<i64: 1, 16, 256>}, {pipeline_mode = #tpu.pipeline_mode<synchronous>, transform_indices = @transform_2, window_bounds = array<i64: 32, 16>}, {pipeline_mode = #tpu.pipeline_mode<synchronous>, transform_indices = @transform_3, window_bounds = array<i64: 32, 1>}, {pipeline_mode = #tpu.pipeline_mode<synchronous>, transform_indices = @transform_4, window_bounds = array<i64: 32, 1>}, {pipeline_mode = #tpu.pipeline_mode<synchronous>, transform_indices = @transform_5, window_bounds = array<i64: 4, 32>}, {pipeline_mode = #tpu.pipeline_mode<synchronous>, transform_indices = @transform_6, window_bounds = array<i64: 32, 4>}, {transform_indices = @transform_7, window_bounds = array<i64: 1, 32, 256>}]} {
    %c0 = arith.constant 0 : index
    %c0_0 = arith.constant 0 : index
    %0 = vector.load %arg3[%c0, %c0_0] : memref<32x16xbf16, #tpu.memory_space<vmem>>, vector<32x16xbf16>
    %c0_1 = arith.constant 0 : index
    %c0_2 = arith.constant 0 : index
    %c0_3 = arith.constant 0 : index
    %1 = vector.load %arg2[%c0_1, %c0_2, %c0_3] : memref<1x16x256xbf16, #tpu.memory_space<vmem>>, vector<1x16x256xbf16>
    %2 = vector.shape_cast %1 : vector<1x16x256xbf16> to vector<16x256xbf16>
    %cst = arith.constant dense<0.000000e+00> : vector<32x256xf32>
    %3 = tpu.matmul %0, %2, %cst {dimension_numbers = #tpu.dot_dimension_numbers<[1], [0], [0], [1], [0, 0, 1, 1], [], []>} : vector<32x16xbf16>, vector<16x256xbf16>, vector<32x256xf32> -> vector<32x256xf32>
    %c0_4 = arith.constant 0 : index
    %c0_5 = arith.constant 0 : index
    %c0_6 = arith.constant 0 : index
    %4 = vector.load %arg1[%c0_4, %c0_5, %c0_6] : memref<1x32x256xbf16, #tpu.memory_space<vmem>>, vector<1x32x256xbf16>
    %5 = vector.shape_cast %4 : vector<1x32x256xbf16> to vector<32x256xbf16>
    %6 = arith.extf %5 : vector<32x256xbf16> to vector<32x256xf32>
    %7 = arith.addf %3, %6 : vector<32x256xf32>
    %c0_7 = arith.constant 0 : index
    %c0_8 = arith.constant 0 : index
    %8 = vector.load %arg6[%c0_7, %c0_8] : memref<4x32xf32, #tpu.memory_space<vmem>>, vector<4x32xf32>
    %c0_9 = arith.constant 0 : index
    %c0_10 = arith.constant 0 : index
    %9 = vector.load %arg7[%c0_9, %c0_10] : memref<32x4xf32, #tpu.memory_space<vmem>>, vector<32x4xf32>
    %c0_11 = arith.constant 0 : index
    %c0_12 = arith.constant 0 : index
    %10 = vector.load %arg4[%c0_11, %c0_12] : memref<32x1xf32, #tpu.memory_space<vmem>>, vector<32x1xf32>
    %c0_13 = arith.constant 0 : index
    %c0_14 = arith.constant 0 : index
    %11 = vector.load %arg5[%c0_13, %c0_14] : memref<32x1xf32, #tpu.memory_space<vmem>>, vector<32x1xf32>
    %cst_15 = arith.constant dense<0.000000e+00> : vector<32xf32>
    %12 = vector.multi_reduction <add>, %7, %cst_15 [1] : vector<32x256xf32> to vector<32xf32>
    %13 = vector.shape_cast %12 : vector<32xf32> to vector<32x1xf32>
    %14 = arith.mulf %7, %7 : vector<32x256xf32>
    %cst_16 = arith.constant dense<0.000000e+00> : vector<32xf32>
    %15 = vector.multi_reduction <add>, %14, %cst_16 [1] : vector<32x256xf32> to vector<32xf32>
    %16 = vector.shape_cast %15 : vector<32xf32> to vector<32x1xf32>
    %cst_17 = arith.constant dense<0.000000e+00> : vector<4x1xf32>
    %17 = tpu.matmul %8, %13, %cst_17 {dimension_numbers = #tpu.dot_dimension_numbers<[1], [0], [0], [1], [0, 0, 1, 1], [], []>} : vector<4x32xf32>, vector<32x1xf32>, vector<4x1xf32> -> vector<4x1xf32>
    %cst_18 = arith.constant dense<0.000000e+00> : vector<4x1xf32>
    %18 = tpu.matmul %8, %16, %cst_18 {dimension_numbers = #tpu.dot_dimension_numbers<[1], [0], [0], [1], [0, 0, 1, 1], [], []>} : vector<4x32xf32>, vector<32x1xf32>, vector<4x1xf32> -> vector<4x1xf32>
    %cst_19 = arith.constant 2.048000e+03 : f32
    %19 = vector.broadcast %cst_19 : f32 to vector<4x1xf32>
    %20 = arith.divf %17, %19 : vector<4x1xf32>
    %cst_20 = arith.constant 2.048000e+03 : f32
    %21 = vector.broadcast %cst_20 : f32 to vector<4x1xf32>
    %22 = arith.divf %18, %21 : vector<4x1xf32>
    %23 = arith.mulf %20, %20 : vector<4x1xf32>
    %24 = arith.subf %22, %23 : vector<4x1xf32>
    %cst_21 = arith.constant 9.99999974E-6 : f32
    %25 = vector.broadcast %cst_21 : f32 to vector<4x1xf32>
    %26 = arith.addf %24, %25 : vector<4x1xf32>
    %27 = math.rsqrt %26 : vector<4x1xf32>
    %cst_22 = arith.constant dense<0.000000e+00> : vector<32x1xf32>
    %28 = tpu.matmul %9, %20, %cst_22 {dimension_numbers = #tpu.dot_dimension_numbers<[1], [0], [0], [1], [0, 0, 1, 1], [], []>} : vector<32x4xf32>, vector<4x1xf32>, vector<32x1xf32> -> vector<32x1xf32>
    %cst_23 = arith.constant dense<0.000000e+00> : vector<32x1xf32>
    %29 = tpu.matmul %9, %27, %cst_23 {dimension_numbers = #tpu.dot_dimension_numbers<[1], [0], [0], [1], [0, 0, 1, 1], [], []>} : vector<32x4xf32>, vector<4x1xf32>, vector<32x1xf32> -> vector<32x1xf32>
    %30 = arith.mulf %29, %10 : vector<32x1xf32>
    %31 = arith.mulf %28, %30 : vector<32x1xf32>
    %32 = arith.subf %11, %31 : vector<32x1xf32>
    %33 = vector.broadcast %30 : vector<32x1xf32> to vector<32x256xf32>
    %34 = arith.mulf %7, %33 : vector<32x256xf32>
    %35 = vector.broadcast %32 : vector<32x1xf32> to vector<32x256xf32>
    %36 = arith.addf %34, %35 : vector<32x256xf32>
    %37 = arith.truncf %36 : vector<32x256xf32> to vector<32x256xbf16>
    %c0_24 = arith.constant 0 : index
    %c0_25 = arith.constant 0 : index
    %c0_26 = arith.constant 0 : index
    %38 = vector.load %arg8[%c0_24, %c0_25, %c0_26] : memref<1x32x256xbf16, #tpu.memory_space<vmem>>, vector<1x32x256xbf16>
    %39 = vector.shape_cast %38 : vector<1x32x256xbf16> to vector<32x256xbf16>
    %40 = vector.shape_cast %37 : vector<32x256xbf16> to vector<1x32x256xbf16>
    tpu.vector_store %arg8[%c0_24, %c0_25, %c0_26], %40 {strides = array<i32>} : memref<1x32x256xbf16, #tpu.memory_space<vmem>>, vector<1x32x256xbf16>,
    return
  }
  func.func @transform_0(%arg0: i32) -> (i32, i32, i32) {
    %c0_i32 = arith.constant 0 : i32
    %c0_i32_0 = arith.constant 0 : i32
    %c0_i32_1 = arith.constant 0 : i32
    return %arg0, %c0_i32, %c0_i32_0 : i32, i32, i32
  }
  func.func @transform_1(%arg0: i32) -> (i32, i32, i32) {
    %c0_i32 = arith.constant 0 : i32
    %c0_i32_0 = arith.constant 0 : i32
    %c0_i32_1 = arith.constant 0 : i32
    return %arg0, %c0_i32, %c0_i32_0 : i32, i32, i32
  }
  func.func @transform_2(%arg0: i32) -> (i32, i32) {
    %c0_i32 = arith.constant 0 : i32
    %c0_i32_0 = arith.constant 0 : i32
    %c0_i32_1 = arith.constant 0 : i32
    return %c0_i32, %c0_i32_0 : i32, i32
  }
  func.func @transform_3(%arg0: i32) -> (i32, i32) {
    %c0_i32 = arith.constant 0 : i32
    %c0_i32_0 = arith.constant 0 : i32
    %c0_i32_1 = arith.constant 0 : i32
    return %c0_i32, %c0_i32_0 : i32, i32
  }
  func.func @transform_4(%arg0: i32) -> (i32, i32) {
    %c0_i32 = arith.constant 0 : i32
    %c0_i32_0 = arith.constant 0 : i32
    %c0_i32_1 = arith.constant 0 : i32
    return %c0_i32, %c0_i32_0 : i32, i32
  }
  func.func @transform_5(%arg0: i32) -> (i32, i32) {
    %c0_i32 = arith.constant 0 : i32
    %c0_i32_0 = arith.constant 0 : i32
    %c0_i32_1 = arith.constant 0 : i32
    return %c0_i32, %c0_i32_0 : i32, i32
  }
  func.func @transform_6(%arg0: i32) -> (i32, i32) {
    %c0_i32 = arith.constant 0 : i32
    %c0_i32_0 = arith.constant 0 : i32
    %c0_i32_1 = arith.constant 0 : i32
    return %c0_i32, %c0_i32_0 : i32, i32
  }
  func.func @transform_7(%arg0: i32) -> (i32, i32, i32) {
    %c0_i32 = arith.constant 0 : i32
    %c0_i32_0 = arith.constant 0 : i32
    %c0_i32_1 = arith.constant 0 : i32
    return %arg0, %c0_i32, %c0_i32_0 : i32, i32, i32
  }
}

</mosaic_0001>

<llo_original>
// kernel: combine_layers_forward.2
$region0: #{combine_layers_forward.2}
  #allocation0 [shape = 'u32[]', space=smem, size = 0x4, offset = 0x4, fixed_abs, tag = 'smem constant byte address 0x4 - core index']
  #allocation1 [shape = 'u32[144,128]{1,0:T(1,128)}', space=vmem, size = 0x12000, scoped, tag = 'internal scratch']
  %s0 = inlined_call_operand.vmem [shape: bf16[2,32,64], index: 0, kind: input, shape index: {}]
  %s1 = inlined_call_operand.vmem [shape: bf16[16,32], index: 1, kind: input, shape index: {}]
  %s2 = inlined_call_operand.vmem [shape: bf16[32,16], index: 2, kind: input, shape index: {}]
  %s3 = inlined_call_operand.vmem [shape: f32[16,1], index: 3, kind: input, shape index: {}]
  %s4 = inlined_call_operand.vmem [shape: f32[16,1], index: 4, kind: input, shape index: {}]
  %s5 = inlined_call_operand.vmem [shape: f32[4,16], index: 5, kind: input, shape index: {}]
  %s6 = inlined_call_operand.vmem [shape: f32[16,4], index: 6, kind: input, shape index: {}]
  %s7 = inlined_call_operand.vmem [shape: bf16[2,32,64], index: 7, kind: output, shape index: {}]
  %s8 = sld [smem:[#allocation0]]
  $region61: #{combine_layers_forward.2} parent=0
    _
  %s10 = ssub.s32 1, %s8
  %s11 = scalar_select 0, %s10, %s8
  loop: start=0, step=1, limit=4
  $region2: #{combine_layers_forward.2} parent=0 // loop_pre_header
    _
  $region3: #{combine_layers_forward.2} parent=0 // loop_header
    %s13 = sphi 0, %s17
    %p14 = scmp.ge.s32.totalorder %s13, 4
    %s23 = sphi 0, %s25
    %s26 = sphi 0, %s23
    %s27 = sphi 0, %s26
    %s43 = sphi 0, %s27
    %s47 = sphi 0, %s47
    %s49 = sphi 0, %s47
    %s50 = sphi 0, %s49
    %s64 = sphi 0, %s50
    %s68 = sphi 0, %s68
    %s70 = sphi 0, %s68
    %s71 = sphi 0, %s70
    %s85 = sphi 0, %s71
    %s89 = sphi 0, %s89
    %s91 = sphi 0, %s89
    %s92 = sphi 0, %s91
    %s106 = sphi 0, %s92
    %s110 = sphi 0, %s110
    %s112 = sphi 0, %s110
    %s113 = sphi 0, %s112
    %s127 = sphi 0, %s113
    %s131 = sphi 0, %s131
    %s133 = sphi 0, %s131
    %s134 = sphi 0, %s133
    %s148 = sphi 0, %s134
    %s152 = sphi 0, %s152
    %s154 = sphi 0, %s152
    %s155 = sphi 0, %s154
    %s169 = sphi 0, %s155
    %s175 = sphi 0, %s177
    %s178 = sphi 0, %s175
    %s179 = sphi 0, %s178
    %s195 = sphi 0, %s179
  $region4: #{combine_layers_forward.2} parent=0 // loop_header_branch
    %16 = sbr.rel (%p14) target = $region8
  $region5: #{combine_layers_forward.2} parent=0 // loop_body
    %s18 = ssub.s32 %s13, 1
    %s19 = ssub.s32 %s13, 2
    %s20 = sadd.s32 %s13, 1
    %s21 = ssub.s32 %s13, %s20
    %p22 = scmp.eq.s32.totalorder %s21, 0
    %s24 = sadd.s32 %s23, 1
    %s25 = scalar_select %p22, %s23, %s24
    %p28 = pneg %p22
    %p29 = scmp.eq.s32.totalorder %s13, 1
    %p30 = por %p28, %p29
    %p31 = scmp.ne.s32.totalorder %s23, %s26
    %p32 = scmp.eq.s32.totalorder %s13, 0
    %p33 = por %p31, %p32
    %p34 = scmp.ne.s32.totalorder %s23, %s26
    %p35 = scmp.eq.s32.totalorder %s18, 1
    %p36 = por %p34, %p35
    %p37 = scmp.ne.s32.totalorder %s26, %s27
    %p38 = scmp.eq.s32.totalorder %s18, 0
    %p39 = por %p37, %p38
    %p40 = scmp.ne.s32.totalorder %s26, %s27
    %p41 = scmp.eq.s32.totalorder %s19, 1
    %p42 = por %p40, %p41
    %p44 = scmp.ne.s32.totalorder %s27, %s43
    %p45 = scmp.eq.s32.totalorder %s19, 0
    %p46 = por %p44, %p45
    %s48 = sadd.s32 %s47, 1
    %p51 = scmp.eq.s32.totalorder %s13, 1
    %p52 = scmp.ne.s32.totalorder %s47, %s49
    %p53 = scmp.eq.s32.totalorder %s13, 0
    %p54 = por %p52, %p53
    %p55 = scmp.ne.s32.totalorder %s47, %s49
    %p56 = scmp.eq.s32.totalorder %s18, 1
    %p57 = por %p55, %p56
    %p58 = scmp.ne.s32.totalorder %s49, %s50
    %p59 = scmp.eq.s32.totalorder %s18, 0
    %p60 = por %p58, %p59
    %p61 = scmp.ne.s32.totalorder %s49, %s50
    %p62 = scmp.eq.s32.totalorder %s19, 1
    %p63 = por %p61, %p62
    %p65 = scmp.ne.s32.totalorder %s50, %s64
    %p66 = scmp.eq.s32.totalorder %s19, 0
    %p67 = por %p65, %p66
    %s69 = sadd.s32 %s68, 1
    %p72 = scmp.eq.s32.totalorder %s13, 1
    %p73 = scmp.ne.s32.totalorder %s68, %s70
    %p74 = scmp.eq.s32.totalorder %s13, 0
    %p75 = por %p73, %p74
    %p76 = scmp.ne.s32.totalorder %s68, %s70
    %p77 = scmp.eq.s32.totalorder %s18, 1
    %p78 = por %p76, %p77
    %p79 = scmp.ne.s32.totalorder %s70, %s71
    %p80 = scmp.eq.s32.totalorder %s18, 0
    %p81 = por %p79, %p80
    %p82 = scmp.ne.s32.totalorder %s70, %s71
    %p83 = scmp.eq.s32.totalorder %s19, 1
    %p84 = por %p82, %p83
    %p86 = scmp.ne.s32.totalorder %s71, %s85
    %p87 = scmp.eq.s32.totalorder %s19, 0
    %p88 = por %p86, %p87
    %s90 = sadd.s32 %s89, 1
    %p93 = scmp.eq.s32.totalorder %s13, 1
    %p94 = scmp.ne.s32.totalorder %s89, %s91
    %p95 = scmp.eq.s32.totalorder %s13, 0
    %p96 = por %p94, %p95
    %p97 = scmp.ne.s32.totalorder %s89, %s91
    %p98 = scmp.eq.s32.totalorder %s18, 1
    %p99 = por %p97, %p98
    %p100 = scmp.ne.s32.totalorder %s91, %s92
    %p101 = scmp.eq.s32.totalorder %s18, 0
    %p102 = por %p100, %p101
    %p103 = scmp.ne.s32.totalorder %s91, %s92
    %p104 = scmp.eq.s32.totalorder %s19, 1
    %p105 = por %p103, %p104
    %p107 = scmp.ne.s32.totalorder %s92, %s106
    %p108 = scmp.eq.s32.totalorder %s19, 0
    %p109 = por %p107, %p108
    %s111 = sadd.s32 %s110, 1
    %p114 = scmp.eq.s32.totalorder %s13, 1
    %p115 = scmp.ne.s32.totalorder %s110, %s112
    %p116 = scmp.eq.s32.totalorder %s13, 0
    %p117 = por %p115, %p116
    %p118 = scmp.ne.s32.totalorder %s110, %s112
    %p119 = scmp.eq.s32.totalorder %s18, 1
    %p120 = por %p118, %p119
    %p121 = scmp.ne.s32.totalorder %s112, %s113
    %p122 = scmp.eq.s32.totalorder %s18, 0
    %p123 = por %p121, %p122
    %p124 = scmp.ne.s32.totalorder %s112, %s113
    %p125 = scmp.eq.s32.totalorder %s19, 1
    %p126 = por %p124, %p125
    %p128 = scmp.ne.s32.totalorder %s113, %s127
    %p129 = scmp.eq.s32.totalorder %s19, 0
    %p130 = por %p128, %p129
    %s132 = sadd.s32 %s131, 1
    %p135 = scmp.eq.s32.totalorder %s13, 1
    %p136 = scmp.ne.s32.totalorder %s131, %s133
    %p137 = scmp.eq.s32.totalorder %s13, 0
    %p138 = por %p136, %p137
    %p139 = scmp.ne.s32.totalorder %s131, %s133
    %p140 = scmp.eq.s32.totalorder %s18, 1
    %p141 = por %p139, %p140
    %p142 = scmp.ne.s32.totalorder %s133, %s134
    %p143 = scmp.eq.s32.totalorder %s18, 0
    %p144 = por %p142, %p143
    %p145 = scmp.ne.s32.totalorder %s133, %s134
    %p146 = scmp.eq.s32.totalorder %s19, 1
    %p147 = por %p145, %p146
    %p149 = scmp.ne.s32.totalorder %s134, %s148
    %p150 = scmp.eq.s32.totalorder %s19, 0
    %p151 = por %p149, %p150
    %s153 = sadd.s32 %s152, 1
    %p156 = scmp.eq.s32.totalorder %s13, 1
    %p157 = scmp.ne.s32.totalorder %s152, %s154
    %p158 = scmp.eq.s32.totalorder %s13, 0
    %p159 = por %p157, %p158
    %p160 = scmp.ne.s32.totalorder %s152, %s154
    %p161 = scmp.eq.s32.totalorder %s18, 1
    %p162 = por %p160, %p161
    %p163 = scmp.ne.s32.totalorder %s154, %s155
    %p164 = scmp.eq.s32.totalorder %s18, 0
    %p165 = por %p163, %p164
    %p166 = scmp.ne.s32.totalorder %s154, %s155
    %p167 = scmp.eq.s32.totalorder %s19, 1
    %p168 = por %p166, %p167
    %p170 = scmp.ne.s32.totalorder %s155, %s169
    %p171 = scmp.eq.s32.totalorder %s19, 0
    %p172 = por %p170, %p171
    %s173 = ssub.s32 %s13, %s20
    %p174 = scmp.eq.s32.totalorder %s173, 0
    %s176 = sadd.s32 %s175, 1
    %s177 = scalar_select %p174, %s175, %s176
    %p180 = pneg %p174
    %p181 = scmp.eq.s32.totalorder %s13, 1
    %p182 = por %p180, %p181
    %p183 = scmp.ne.s32.totalorder %s175, %s178
    %p184 = scmp.eq.s32.totalorder %s13, 0
    %p185 = por %p183, %p184
    %p186 = scmp.ne.s32.totalorder %s175, %s178
    %p187 = scmp.eq.s32.totalorder %s18, 1
    %p188 = por %p186, %p187
    %p189 = scmp.ne.s32.totalorder %s178, %s179
    %p190 = scmp.eq.s32.totalorder %s18, 0
    %p191 = por %p189, %p190
    %p192 = scmp.ne.s32.totalorder %s178, %s179
    %p193 = scmp.eq.s32.totalorder %s19, 1
    %p194 = por %p192, %p193
    %p196 = scmp.ne.s32.totalorder %s179, %s195
    %p197 = scmp.eq.s32.totalorder %s19, 0
    %p198 = por %p196, %p197
    %p199 = scmp.le.s32.totalorder 1, %s13
    %p200 = scmp.lt.s32.totalorder %s13, 3
    %p201 = pnand %p199, %p200
    %p202 = pneg %p201
    // Predicated region
    $region9: #{combine_layers_forward.2} parent=5 // pred_check
      _
    $region10: #{combine_layers_forward.2} parent=5 // pred_check_branch
      %204 = sbr.rel (%p201) target = $region12
    $region11: #{combine_layers_forward.2} parent=5 // pred_region
      %s205 = ssub.s32 %s13, 1
      // Predicated region
      $region13: #{combine_layers_forward.2} parent=11 // pred_check
        %p206 = pneg %p60
      $region14: #{combine_layers_forward.2} parent=11 // pred_check_branch
        %208 = sbr.rel (%p206) target = $region16
      $region15: #{combine_layers_forward.2} parent=11 // pred_region
        _
      $region16: #{combine_layers_forward.2} parent=11 // pred_fallthru
        _
      // Predicated region
      $region17: #{combine_layers_forward.2} parent=11 // pred_check
        %p209 = pneg %p81
      $region18: #{combine_layers_forward.2} parent=11 // pred_check_branch
        %211 = sbr.rel (%p209) target = $region20
      $region19: #{combine_layers_forward.2} parent=11 // pred_region
        _
      $region20: #{combine_layers_forward.2} parent=11 // pred_fallthru
        _
      // Predicated region
      $region21: #{combine_layers_forward.2} parent=11 // pred_check
        %p212 = pneg %p102
      $region22: #{combine_layers_forward.2} parent=11 // pred_check_branch
        %214 = sbr.rel (%p212) target = $region24
      $region23: #{combine_layers_forward.2} parent=11 // pred_region
        _
      $region24: #{combine_layers_forward.2} parent=11 // pred_fallthru
        _
      // Predicated region
      $region25: #{combine_layers_forward.2} parent=11 // pred_check
        %p215 = pneg %p123
      $region26: #{combine_layers_forward.2} parent=11 // pred_check_branch
        %217 = sbr.rel (%p215) target = $region28
      $region27: #{combine_layers_forward.2} parent=11 // pred_region
        _
      $region28: #{combine_layers_forward.2} parent=11 // pred_fallthru
        _
      // Predicated region
      $region29: #{combine_layers_forward.2} parent=11 // pred_check
        %p218 = pneg %p144
      $region30: #{combine_layers_forward.2} parent=11 // pred_check_branch
        %220 = sbr.rel (%p218) target = $region32
      $region31: #{combine_layers_forward.2} parent=11 // pred_region
        _
      $region32: #{combine_layers_forward.2} parent=11 // pred_fallthru
        _
      // Predicated region
      $region33: #{combine_layers_forward.2} parent=11 // pred_check
        %p221 = pneg %p165
      $region34: #{combine_layers_forward.2} parent=11 // pred_check_branch
        %223 = sbr.rel (%p221) target = $region36
      $region35: #{combine_layers_forward.2} parent=11 // pred_region
        _
      $region36: #{combine_layers_forward.2} parent=11 // pred_fallthru
        _
    $region12: #{combine_layers_forward.2} parent=5 // pred_fallthru
      _
    %p224 = scmp.lt.s32.totalorder %s13, 2
    // Predicated region
    $region37: #{combine_layers_forward.2} parent=5 // pred_check
      %p225 = pneg %p224
    $region38: #{combine_layers_forward.2} parent=5 // pred_check_branch
      %227 = sbr.rel (%p225) target = $region40
    $region39: #{combine_layers_forward.2} parent=5 // pred_region
      // Predicated region
      $region41: #{combine_layers_forward.2} parent=39 // pred_check
        %p228 = pneg %p33
      $region42: #{combine_layers_forward.2} parent=39 // pred_check_branch
        %230 = sbr.rel (%p228) target = $region44
      $region43: #{combine_layers_forward.2} parent=39 // pred_region
        %p231 = scmp.lt.s32.totalorder %s13, 1
        %s232 = scalar_select %p231, %s13, 1
        %s233 = smul.addr %s232, 4
        %s234 = smul.addr %s233, 4
        %s235 = scalar_lea.vmem %s0, %s234
      $region44: #{combine_layers_forward.2} parent=39 // pred_fallthru
        _
    $region40: #{combine_layers_forward.2} parent=5 // pred_fallthru
      _
    %p236 = scmp.le.s32.totalorder 1, %s13
    %p237 = scmp.lt.s32.totalorder %s13, 3
    %p238 = pnand %p236, %p237
    %p239 = pneg %p238
    // Predicated region
    $region45: #{combine_layers_forward.2} parent=5 // pred_check
      _
    $region46: #{combine_layers_forward.2} parent=5 // pred_check_branch
      %241 = sbr.rel (%p238) target = $region48
    $region47: #{combine_layers_forward.2} parent=5 // pred_region
      %s242 = ssub.s32 %s13, 1
      %p243 = scmp.lt.s32.totalorder %s18, 1
      %s244 = scalar_select %p243, %s18, 1
      %s245 = smul.addr %s244, 4
      %s246 = smul.addr %s245, 4
      %s247 = scalar_lea.vmem %s0, %s246
      %p248 = pneg %p39
      %p249 = pneg %p36
      %p250 = pneg %p60
      %p251 = pneg %p57
      %p252 = pneg %p81
      %p253 = pneg %p78
      %p254 = pneg %p102
      %p255 = pneg %p99
      %p256 = pneg %p123
      %p257 = pneg %p120
      %p258 = pneg %p144
      %p259 = pneg %p141
      %p260 = pneg %p165
      %p261 = pneg %p162
      %p262 = pneg %p191
      %p263 = pneg %p188
      %p264 = scmp.lt.s32.totalorder %s18, 1
      %s265 = scalar_select %p264, %s18, 1
      %s266 = smul.addr %s265, 4
      %s267 = smul.addr %s266, 4
      %s268 = scalar_lea.vmem %s7, %s267
      %p269 = scmp.lt.s32.totalorder %s18, 1
      %s270 = scalar_select %p269, %s18, 1
      %s271 = smul.addr %s270, 4
      %s272 = smul.addr %s271, 4
      %s273 = scalar_lea.vmem %s0, %s272
      %p274 = scmp.lt.s32.totalorder %s18, 1
      %s275 = scalar_select %p274, %s18, 1
      %s276 = smul.addr %s275, 4
      %s277 = smul.addr %s276, 4
      %s278 = scalar_lea.vmem %s7, %s277
      %v280 = vld [vmem:[%s273] sm:$0xf]
      %v281 = vld [vmem:[%s273 + $0x4] sm:$0xf]
      %v282 = vld [vmem:[%s273 + $0x8] sm:$0xf]
      %v283 = vld [vmem:[%s273 + $0xc] sm:$0xf]
      %v284 = vld [vmem:[%s1] sm:$0xf]
      %v285 = vld [vmem:[%s1 + $0x4] sm:$0xf]
      %v288 = vunpack.c.l.b16 %v284
      %v289 = vunpack.c.l.b16 %v285
      %v290 = vpack.c.b16 %v289, %v288
      %v295 = vunpack.c.l.b16 %v280
      %v296 = vunpack.c.l.b16 %v281
      %v297 = vunpack.c.l.b16 %v282
      %v298 = vunpack.c.l.b16 %v283
      %v299 = vpack.c.b16 %v296, %v295
      %v300 = vpack.c.b16 %v298, %v297
      %vm303 = vcmask 261120
      %v305 = vsel %vm303, %v290, 0
      %307 = vmatprep.subr.bf16.mxu0 0
      %308 = vmatpush1.bf16.msra.mxu0 0
      %309 = vmatprep.subr.bf16.mxu0 0
      %310 = vmatpush1.bf16.msra.mxu0 0
      %311 = vmatprep.subr.bf16.mxu0 0
      %312 = vmatpush1.bf16.msra.mxu0 0
      %313 = vmatprep.subr.bf16.mxu0 0
      %314 = vmatpush1.bf16.msra.mxu0 0
      %315 = vmatprep.subr.bf16.mxu0 0
      %316 = vmatpush1.bf16.msra.mxu0 0
      %317 = vmatprep.subr.bf16.mxu0 0
      %318 = vmatpush1.bf16.msra.mxu0 0
      %319 = vmatprep.subr.bf16.mxu0 0
      %320 = vmatpush1.bf16.msra.mxu0 %v300
      %321 = vmatprep.subr.bf16.mxu0 0
      %322 = vmatpush1.bf16.msra.mxu0 %v299
      %323 = vmatprep.subr.bf16.mxu0 0
      %324 = vmatpush2.bf16.msra.mxu0 0
      %325 = vmatprep.subr.bf16.mxu0 0
      %326 = vmatpush2.bf16.msra.mxu0 0
      %327 = vmatprep.subr.bf16.mxu0 0
      %328 = vmatpush2.bf16.msra.mxu0 0
      %329 = vmatprep.subr.bf16.mxu0 0
      %330 = vmatpush2.bf16.msra.mxu0 0
      %331 = vmatprep.subr.bf16.mxu0 0
      %332 = vmatpush2.bf16.msra.mxu0 0
      %333 = vmatprep.subr.bf16.mxu0 0
      %334 = vmatpush2.bf16.msra.mxu0 0
      %335 = vmatprep.subr.bf16.mxu0 0
      %336 = vmatpush2.bf16.msra.mxu0 0
      %337 = vmatprep.subr.bf16.mxu0 0
      %338 = vmatpush2.bf16.msra.mxu0 0
      %339 = vmatprep.mubr.bf16.mxu0 0
      %340 = vmatmul.mubr.bf16.gmra.mxu0 %v305
      %v341 = vpop.f32.mrf.mxu0
      %v342 = vadd.f32 0.0, %v341
      %v343 = vpop.f32.mrf.mxu0
      %v344 = vpop.f32.mrf.mxu0
      %v345 = vadd.f32 0.0, %v344
      %v346 = vpop.f32.mrf.mxu0
      %347 = vdwg.mxu0
      %v348 = vld [vmem:[%s5] sm:$0xf]
      %v349 = vld [vmem:[%s6] sm:$0xff]
      %v350 = vld [vmem:[%s6 + $0x8] sm:$0xff]
      %v351 = vld [vmem:[%s3] sm:$0xff]
      %v352 = vld [vmem:[%s3 + $0x8] sm:$0xff]
      %v353 = vld [vmem:[%s4] sm:$0xff]
      %v354 = vld [vmem:[%s4 + $0x8] sm:$0xff]
      %vm355 = vcmask 523264
      %v356 = vsel %vm355, %v342, 0.0
      %357 = vadd.xlane.f32.xlu0 %v356
      %v358 = vpop.xlane.xlu0 %357
      %v359 = vsel %vm355, %v345, 0.0
      %360 = vadd.xlane.f32.xlu0 %v359
      %v361 = vpop.xlane.xlu0 %360
      %v362 = vmul.f32 %v342, %v342
      %v363 = vmul.f32 %v345, %v345
      %v364 = vsel %vm355, %v362, 0.0
      %365 = vadd.xlane.f32.xlu0 %v364
      %v366 = vpop.xlane.xlu0 %365
      %v367 = vsel %vm355, %v363, 0.0
      %368 = vadd.xlane.f32.xlu0 %v367
      %v369 = vpop.xlane.xlu0 %368
      %vm370 = vcmask 130048
      %v372 = vsel %vm370, %v348, 0
      %374 = vmatprep.subr.mxu0 0.0
      %375 = vmatpush1.msra.mxu0 0.0
      %376 = vmatprep.subr.mxu0 0.0
      %377 = vmatpush1.msra.mxu0 0.0
      %378 = vmatprep.subr.mxu0 0.0
      %379 = vmatpush1.msra.mxu0 0.0
      %380 = vmatprep.subr.mxu0 0.0
      %381 = vmatpush1.msra.mxu0 0.0
      %382 = vmatprep.subr.mxu0 0.0
      %383 = vmatpush1.msra.mxu0 0.0
      %384 = vmatprep.subr.mxu0 0.0
      %385 = vmatpush1.msra.mxu0 0.0
      %386 = vmatprep.subr.mxu0 0.0
      %387 = vmatpush1.msra.mxu0 0.0
      %388 = vmatprep.subr.mxu0 0.0
      %389 = vmatpush1.msra.mxu0 0.0
      %390 = vmatprep.subr.mxu0 0.0
      %391 = vmatpush1.msra.mxu0 0.0
      %392 = vmatprep.subr.mxu0 0.0
      %393 = vmatpush1.msra.mxu0 0.0
      %394 = vmatprep.subr.mxu0 0.0
      %395 = vmatpush1.msra.mxu0 0.0
      %396 = vmatprep.subr.mxu0 0.0
      %397 = vmatpush1.msra.mxu0 0.0
      %398 = vmatprep.subr.mxu0 0.0
      %399 = vmatpush1.msra.mxu0 0.0
      %400 = vmatprep.subr.mxu0 0.0
      %401 = vmatpush1.msra.mxu0 0.0
      %402 = vmatprep.subr.mxu0 0.0
      %403 = vmatpush1.msra.mxu0 %v361
      %404 = vmatprep.subr.mxu0 0.0
      %405 = vmatpush1.msra.mxu0 %v358
      %406 = vmatprep.subr.mxu0 0.0
      %407 = vmatpush2.msra.mxu0 0.0
      %408 = vmatprep.subr.mxu0 0.0
      %409 = vmatpush2.msra.mxu0 0.0
      %410 = vmatprep.subr.mxu0 0.0
      %411 = vmatpush2.msra.mxu0 0.0
      %412 = vmatprep.subr.mxu0 0.0
      %413 = vmatpush2.msra.mxu0 0.0
      %414 = vmatprep.subr.mxu0 0.0
      %415 = vmatpush2.msra.mxu0 0.0
      %416 = vmatprep.subr.mxu0 0.0
      %417 = vmatpush2.msra.mxu0 0.0
      %418 = vmatprep.subr.mxu0 0.0
      %419 = vmatpush2.msra.mxu0 0.0
      %420 = vmatprep.subr.mxu0 0.0
      %421 = vmatpush2.msra.mxu0 0.0
      %422 = vmatprep.subr.mxu0 0.0
      %423 = vmatpush2.msra.mxu0 0.0
      %424 = vmatprep.subr.mxu0 0.0
      %425 = vmatpush2.msra.mxu0 0.0
      %426 = vmatprep.subr.mxu0 0.0
      %427 = vmatpush2.msra.mxu0 0.0
      %428 = vmatprep.subr.mxu0 0.0
      %429 = vmatpush2.msra.mxu0 0.0
      %430 = vmatprep.subr.mxu0 0.0
      %431 = vmatpush2.msra.mxu0 0.0
      %432 = vmatprep.subr.mxu0 0.0
      %433 = vmatpush2.msra.mxu0 0.0
      %434 = vmatprep.subr.mxu0 0.0
      %435 = vmatpush2.msra.mxu0 0.0
      %436 = vmatprep.subr.mxu0 0.0
      %437 = vmatpush2.msra.mxu0 0.0
      %438 = vmatprep.mubr.f32.mxu0 0.0
      %439 = vmatmul.mubr.f32.gmra.mxu0 %v372
      %v440 = vpop.f32.mrf.mxu0
      %v441 = vadd.f32 0.0, %v440
      %v442 = vpop.f32.mrf.mxu0
      %443 = vdwg.mxu0
      %444 = vmatprep.subr.mxu0 0.0
      %445 = vmatpush1.msra.mxu0 0.0
      %446 = vmatprep.subr.mxu0 0.0
      %447 = vmatpush1.msra.mxu0 0.0
      %448 = vmatprep.subr.mxu0 0.0
      %449 = vmatpush1.msra.mxu0 0.0
      %450 = vmatprep.subr.mxu0 0.0
      %451 = vmatpush1.msra.mxu0 0.0
      %452 = vmatprep.subr.mxu0 0.0
      %453 = vmatpush1.msra.mxu0 0.0
      %454 = vmatprep.subr.mxu0 0.0
      %455 = vmatpush1.msra.mxu0 0.0
      %456 = vmatprep.subr.mxu0 0.0
      %457 = vmatpush1.msra.mxu0 0.0
      %458 = vmatprep.subr.mxu0 0.0
      %459 = vmatpush1.msra.mxu0 0.0
      %460 = vmatprep.subr.mxu0 0.0
      %461 = vmatpush1.msra.mxu0 0.0
      %462 = vmatprep.subr.mxu0 0.0
      %463 = vmatpush1.msra.mxu0 0.0
      %464 = vmatprep.subr.mxu0 0.0
      %465 = vmatpush1.msra.mxu0 0.0
      %466 = vmatprep.subr.mxu0 0.0
      %467 = vmatpush1.msra.mxu0 0.0
      %468 = vmatprep.subr.mxu0 0.0
      %469 = vmatpush1.msra.mxu0 0.0
      %470 = vmatprep.subr.mxu0 0.0
      %471 = vmatpush1.msra.mxu0 0.0
      %472 = vmatprep.subr.mxu0 0.0
      %473 = vmatpush1.msra.mxu0 %v369
      %474 = vmatprep.subr.mxu0 0.0
      %475 = vmatpush1.msra.mxu0 %v366
      %476 = vmatprep.subr.mxu0 0.0
      %477 = vmatpush2.msra.mxu0 0.0
      %478 = vmatprep.subr.mxu0 0.0
      %479 = vmatpush2.msra.mxu0 0.0
      %480 = vmatprep.subr.mxu0 0.0
      %481 = vmatpush2.msra.mxu0 0.0
      %482 = vmatprep.subr.mxu0 0.0
      %483 = vmatpush2.msra.mxu0 0.0
      %484 = vmatprep.subr.mxu0 0.0
      %485 = vmatpush2.msra.mxu0 0.0
      %486 = vmatprep.subr.mxu0 0.0
      %487 = vmatpush2.msra.mxu0 0.0
      %488 = vmatprep.subr.mxu0 0.0
      %489 = vmatpush2.msra.mxu0 0.0
      %490 = vmatprep.subr.mxu0 0.0
      %491 = vmatpush2.msra.mxu0 0.0
      %492 = vmatprep.subr.mxu0 0.0
      %493 = vmatpush2.msra.mxu0 0.0
      %494 = vmatprep.subr.mxu0 0.0
      %495 = vmatpush2.msra.mxu0 0.0
      %496 = vmatprep.subr.mxu0 0.0
      %497 = vmatpush2.msra.mxu0 0.0
      %498 = vmatprep.subr.mxu0 0.0
      %499 = vmatpush2.msra.mxu0 0.0
      %500 = vmatprep.subr.mxu0 0.0
      %501 = vmatpush2.msra.mxu0 0.0
      %502 = vmatprep.subr.mxu0 0.0
      %503 = vmatpush2.msra.mxu0 0.0
      %504 = vmatprep.subr.mxu0 0.0
      %505 = vmatpush2.msra.mxu0 0.0
      %506 = vmatprep.subr.mxu0 0.0
      %507 = vmatpush2.msra.mxu0 0.0
      %508 = vmatprep.mubr.f32.mxu0 0.0
      %509 = vmatmul.mubr.f32.gmra.mxu0 %v372
      %v510 = vpop.f32.mrf.mxu0
      %v511 = vadd.f32 0.0, %v510
      %v512 = vpop.f32.mrf.mxu0
      %513 = vdwg.mxu0
      %v514 = vrcp.pop 256.0
      %v515 = vmul.f32 %v441, %v514
      %v516 = vmul.f32 %v511, %v514
      %v517 = vmul.f32 %v515, %v515
      %v518 = vsub.f32 %v516, %v517
      %v519 = vadd.f32 %v518, 1e-05
      %v520 = vrsqrt.pop %v519
      %vm521 = vcmask 31744
      %v523 = vsel %vm521, %v349, 0
      %v526 = vsel %vm521, %v350, 0
      %vm528 = vcmask 1043456
      %v530 = vsel %vm528, %v515, 0
      %532 = vmatprep.subr.mxu0 0.0
      %533 = vmatpush1.msra.mxu0 0.0
      %534 = vmatprep.subr.mxu0 0.0
      %535 = vmatpush1.msra.mxu0 0.0
      %536 = vmatprep.subr.mxu0 0.0
      %537 = vmatpush1.msra.mxu0 0.0
      %538 = vmatprep.subr.mxu0 0.0
      %539 = vmatpush1.msra.mxu0 0.0
      %540 = vmatprep.subr.mxu0 0.0
      %541 = vmatpush1.msra.mxu0 0.0
      %542 = vmatprep.subr.mxu0 0.0
      %543 = vmatpush1.msra.mxu0 0.0
      %544 = vmatprep.subr.mxu0 0.0
      %545 = vmatpush1.msra.mxu0 0.0
      %546 = vmatprep.subr.mxu0 0.0
      %547 = vmatpush1.msra.mxu0 0.0
      %548 = vmatprep.subr.mxu0 0.0
      %549 = vmatpush1.msra.mxu0 0.0
      %550 = vmatprep.subr.mxu0 0.0
      %551 = vmatpush1.msra.mxu0 0.0
      %552 = vmatprep.subr.mxu0 0.0
      %553 = vmatpush1.msra.mxu0 0.0
      %554 = vmatprep.subr.mxu0 0.0
      %555 = vmatpush1.msra.mxu0 0.0
      %556 = vmatprep.subr.mxu0 0.0
      %557 = vmatpush1.msra.mxu0 0.0
      %558 = vmatprep.subr.mxu0 0.0
      %559 = vmatpush1.msra.mxu0 0.0
      %560 = vmatprep.subr.mxu0 0.0
      %561 = vmatpush1.msra.mxu0 0.0
      %562 = vmatprep.subr.mxu0 0.0
      %563 = vmatpush1.msra.mxu0 %v530
      %564 = vmatprep.subr.mxu0 0.0
      %565 = vmatpush2.msra.mxu0 0.0
      %566 = vmatprep.subr.mxu0 0.0
      %567 = vmatpush2.msra.mxu0 0.0
      %568 = vmatprep.subr.mxu0 0.0
      %569 = vmatpush2.msra.mxu0 0.0
      %570 = vmatprep.subr.mxu0 0.0
      %571 = vmatpush2.msra.mxu0 0.0
      %572 = vmatprep.subr.mxu0 0.0
      %573 = vmatpush2.msra.mxu0 0.0
      %574 = vmatprep.subr.mxu0 0.0
      %575 = vmatpush2.msra.mxu0 0.0
      %576 = vmatprep.subr.mxu0 0.0
      %577 = vmatpush2.msra.mxu0 0.0
      %578 = vmatprep.subr.mxu0 0.0
      %579 = vmatpush2.msra.mxu0 0.0
      %580 = vmatprep.subr.mxu0 0.0
      %581 = vmatpush2.msra.mxu0 0.0
      %582 = vmatprep.subr.mxu0 0.0
      %583 = vmatpush2.msra.mxu0 0.0
      %584 = vmatprep.subr.mxu0 0.0
      %585 = vmatpush2.msra.mxu0 0.0
      %586 = vmatprep.subr.mxu0 0.0
      %587 = vmatpush2.msra.mxu0 0.0
      %588 = vmatprep.subr.mxu0 0.0
      %589 = vmatpush2.msra.mxu0 0.0
      %590 = vmatprep.subr.mxu0 0.0
      %591 = vmatpush2.msra.mxu0 0.0
      %592 = vmatprep.subr.mxu0 0.0
      %593 = vmatpush2.msra.mxu0 0.0
      %594 = vmatprep.subr.mxu0 0.0
      %595 = vmatpush2.msra.mxu0 0.0
      %596 = vmatprep.mubr.f32.mxu0 0.0
      %597 = vmatmul.mubr.f32.gmra.mxu0 %v523
      %v598 = vpop.f32.mrf.mxu0
      %v599 = vadd.f32 0.0, %v598
      %v600 = vpop.f32.mrf.mxu0
      %601 = vmatprep.mubr.f32.mxu0 0.0
      %602 = vmatmul.mubr.f32.gmra.mxu0 %v526
      %v603 = vpop.f32.mrf.mxu0
      %v604 = vadd.f32 0.0, %v603
      %v605 = vpop.f32.mrf.mxu0
      %606 = vdwg.mxu0
      %v608 = vsel %vm528, %v520, 0
      %610 = vmatprep.subr.mxu0 0.0
      %611 = vmatpush1.msra.mxu0 0.0
      %612 = vmatprep.subr.mxu0 0.0
      %613 = vmatpush1.msra.mxu0 0.0
      %614 = vmatprep.subr.mxu0 0.0
      %615 = vmatpush1.msra.mxu0 0.0
      %616 = vmatprep.subr.mxu0 0.0
      %617 = vmatpush1.msra.mxu0 0.0
      %618 = vmatprep.subr.mxu0 0.0
      %619 = vmatpush1.msra.mxu0 0.0
      %620 = vmatprep.subr.mxu0 0.0
      %621 = vmatpush1.msra.mxu0 0.0
      %622 = vmatprep.subr.mxu0 0.0
      %623 = vmatpush1.msra.mxu0 0.0
      %624 = vmatprep.subr.mxu0 0.0
      %625 = vmatpush1.msra.mxu0 0.0
      %626 = vmatprep.subr.mxu0 0.0
      %627 = vmatpush1.msra.mxu0 0.0
      %628 = vmatprep.subr.mxu0 0.0
      %629 = vmatpush1.msra.mxu0 0.0
      %630 = vmatprep.subr.mxu0 0.0
      %631 = vmatpush1.msra.mxu0 0.0
      %632 = vmatprep.subr.mxu0 0.0
      %633 = vmatpush1.msra.mxu0 0.0
      %634 = vmatprep.subr.mxu0 0.0
      %635 = vmatpush1.msra.mxu0 0.0
      %636 = vmatprep.subr.mxu0 0.0
      %637 = vmatpush1.msra.mxu0 0.0
      %638 = vmatprep.subr.mxu0 0.0
      %639 = vmatpush1.msra.mxu0 0.0
      %640 = vmatprep.subr.mxu0 0.0
      %641 = vmatpush1.msra.mxu0 %v608
      %642 = vmatprep.subr.mxu0 0.0
      %643 = vmatpush2.msra.mxu0 0.0
      %644 = vmatprep.subr.mxu0 0.0
      %645 = vmatpush2.msra.mxu0 0.0
      %646 = vmatprep.subr.mxu0 0.0
      %647 = vmatpush2.msra.mxu0 0.0
      %648 = vmatprep.subr.mxu0 0.0
      %649 = vmatpush2.msra.mxu0 0.0
      %650 = vmatprep.subr.mxu0 0.0
      %651 = vmatpush2.msra.mxu0 0.0
      %652 = vmatprep.subr.mxu0 0.0
      %653 = vmatpush2.msra.mxu0 0.0
      %654 = vmatprep.subr.mxu0 0.0
      %655 = vmatpush2.msra.mxu0 0.0
      %656 = vmatprep.subr.mxu0 0.0
      %657 = vmatpush2.msra.mxu0 0.0
      %658 = vmatprep.subr.mxu0 0.0
      %659 = vmatpush2.msra.mxu0 0.0
      %660 = vmatprep.subr.mxu0 0.0
      %661 = vmatpush2.msra.mxu0 0.0
      %662 = vmatprep.subr.mxu0 0.0
      %663 = vmatpush2.msra.mxu0 0.0
      %664 = vmatprep.subr.mxu0 0.0
      %665 = vmatpush2.msra.mxu0 0.0
      %666 = vmatprep.subr.mxu0 0.0
      %667 = vmatpush2.msra.mxu0 0.0
      %668 = vmatprep.subr.mxu0 0.0
      %669 = vmatpush2.msra.mxu0 0.0
      %670 = vmatprep.subr.mxu0 0.0
      %671 = vmatpush2.msra.mxu0 0.0
      %672 = vmatprep.subr.mxu0 0.0
      %673 = vmatpush2.msra.mxu0 0.0
      %674 = vmatprep.mubr.f32.mxu0 0.0
      %675 = vmatmul.mubr.f32.gmra.mxu0 %v523
      %v676 = vpop.f32.mrf.mxu0
      %v677 = vadd.f32 0.0, %v676
      %v678 = vpop.f32.mrf.mxu0
      %679 = vmatprep.mubr.f32.mxu0 0.0
      %680 = vmatmul.mubr.f32.gmra.mxu0 %v526
      %v681 = vpop.f32.mrf.mxu0
      %v682 = vadd.f32 0.0, %v681
      %v683 = vpop.f32.mrf.mxu0
      %684 = vdwg.mxu0
      %v685 = vmul.f32 %v677, %v351
      %v686 = vmul.f32 %v682, %v352
      %v687 = vmul.f32 %v599, %v685
      %v688 = vmul.f32 %v604, %v686
      %v689 = vsub.f32 %v353, %v687
      %v690 = vsub.f32 %v354, %v688
      %692 = vset.pattern.permute.xlu0 0
      %693 = vperm.xlu0 %692, %v685
      %v694 = vpop.permute.xlu0 %693
      %697 = vset.pattern.permute.xlu0 0
      %698 = vperm.xlu0 %697, %v686
      %v699 = vpop.permute.xlu0 %698
      %v701 = vmul.f32 %v342, %v694
      %v702 = vmul.f32 %v345, %v699
      %704 = vset.pattern.permute.xlu0 0
      %705 = vperm.xlu0 %704, %v689
      %v706 = vpop.permute.xlu0 %705
      %709 = vset.pattern.permute.xlu0 0
      %710 = vperm.xlu0 %709, %v690
      %v711 = vpop.permute.xlu0 %710
      %v713 = vadd.f32 %v701, %v706
      %v714 = vadd.f32 %v702, %v711
      %v715 = vmax.f32 %v713, 0.0
      %v716 = vmax.f32 %v714, 0.0
      %v717 = vld [vmem:[%s2] sm:$0xf]
      %v718 = vld [vmem:[%s2 + $0x4] sm:$0xf]
      %v719 = vld [vmem:[%s2 + $0x8] sm:$0xf]
      %v720 = vld [vmem:[%s2 + $0xc] sm:$0xf]
      %v721 = vpack.c.bf16 %v716, %v715
      %v726 = vunpack.c.l.b16 %v717
      %v727 = vunpack.c.l.b16 %v718
      %v728 = vunpack.c.l.b16 %v719
      %v729 = vunpack.c.l.b16 %v720
      %v730 = vpack.c.b16 %v727, %v726
      %v731 = vpack.c.b16 %v729, %v728
      %v733 = vsel %vm370, %v730, 0
      %v736 = vsel %vm370, %v731, 0
      %738 = vmatprep.subr.bf16.mxu0 0
      %739 = vmatpush1.bf16.msra.mxu0 0
      %740 = vmatprep.subr.bf16.mxu0 0
      %741 = vmatpush1.bf16.msra.mxu0 0
      %742 = vmatprep.subr.bf16.mxu0 0
      %743 = vmatpush1.bf16.msra.mxu0 0
      %744 = vmatprep.subr.bf16.mxu0 0
      %745 = vmatpush1.bf16.msra.mxu0 0
      %746 = vmatprep.subr.bf16.mxu0 0
      %747 = vmatpush1.bf16.msra.mxu0 0
      %748 = vmatprep.subr.bf16.mxu0 0
      %749 = vmatpush1.bf16.msra.mxu0 0
      %750 = vmatprep.subr.bf16.mxu0 0
      %751 = vmatpush1.bf16.msra.mxu0 0
      %752 = vmatprep.subr.bf16.mxu0 0
      %753 = vmatpush1.bf16.msra.mxu0 %v721
      %754 = vmatprep.subr.bf16.mxu0 0
      %755 = vmatpush2.bf16.msra.mxu0 0
      %756 = vmatprep.subr.bf16.mxu0 0
      %757 = vmatpush2.bf16.msra.mxu0 0
      %758 = vmatprep.subr.bf16.mxu0 0
      %759 = vmatpush2.bf16.msra.mxu0 0
      %760 = vmatprep.subr.bf16.mxu0 0
      %761 = vmatpush2.bf16.msra.mxu0 0
      %762 = vmatprep.subr.bf16.mxu0 0
      %763 = vmatpush2.bf16.msra.mxu0 0
      %764 = vmatprep.subr.bf16.mxu0 0
      %765 = vmatpush2.bf16.msra.mxu0 0
      %766 = vmatprep.subr.bf16.mxu0 0
      %767 = vmatpush2.bf16.msra.mxu0 0
      %768 = vmatprep.subr.bf16.mxu0 0
      %769 = vmatpush2.bf16.msra.mxu0 0
      %770 = vmatprep.mubr.bf16.mxu0 0
      %771 = vmatmul.mubr.bf16.gmra.mxu0 %v733
      %v772 = vpop.f32.mrf.mxu0
      %v773 = vadd.f32 0.0, %v772
      %v774 = vpop.f32.mrf.mxu0
      %v775 = vpop.f32.mrf.mxu0
      %v776 = vadd.f32 0.0, %v775
      %v777 = vpop.f32.mrf.mxu0
      %778 = vmatprep.mubr.bf16.mxu0 0
      %779 = vmatmul.mubr.bf16.gmra.mxu0 %v736
      %v780 = vpop.f32.mrf.mxu0
      %v781 = vadd.f32 0.0, %v780
      %v782 = vpop.f32.mrf.mxu0
      %v783 = vpop.f32.mrf.mxu0
      %v784 = vadd.f32 0.0, %v783
      %v785 = vpop.f32.mrf.mxu0
      %786 = vdwg.mxu0
      %v787 = vpack.c.bf16 %v776, %v773
      %v788 = vpack.c.bf16 %v784, %v781
      %v791 = vunpack.c.l.b16 %v787
      %v792 = vunpack.c.h.b16 %v787
      %v793 = vunpack.c.l.b16 %v788
      %v794 = vunpack.c.h.b16 %v788
      %v795 = vpack.c.b16 %v791, %v791
      %v796 = vpack.c.b16 %v792, %v792
      %v797 = vpack.c.b16 %v793, %v793
      %v798 = vpack.c.b16 %v794, %v794
      %vm803 = vcmask 519168
      %804 = vst.msk [vmem:[%s278] sm:$0xf] %vm803, %v795
      %805 = vst.msk [vmem:[%s278 + $0x4] sm:$0xf] %vm803, %v796
      %806 = vst.msk [vmem:[%s278 + $0x8] sm:$0xf] %vm803, %v797
      %807 = vst.msk [vmem:[%s278 + $0xc] sm:$0xf] %vm803, %v798
      %p808 = scmp.lt.s32.totalorder %s18, 1
      %s809 = scalar_select %p808, %s18, 1
      %s810 = smul.addr %s809, 4
      %s811 = smul.addr %s810, 4
      %s812 = scalar_lea.vmem %s7, %s811
      // Predicated region
      $region49: #{combine_layers_forward.2} parent=47 // pred_check
        %p813 = pneg %p188
      $region50: #{combine_layers_forward.2} parent=47 // pred_check_branch
        %815 = sbr.rel (%p813) target = $region52
      $region51: #{combine_layers_forward.2} parent=47 // pred_region
        _
      $region52: #{combine_layers_forward.2} parent=47 // pred_fallthru
        _
    $region48: #{combine_layers_forward.2} parent=5 // pred_fallthru
      _
    %p816 = scmp.le.s32.totalorder 2, %s13
    // Predicated region
    $region53: #{combine_layers_forward.2} parent=5 // pred_check
      %p817 = pneg %p816
    $region54: #{combine_layers_forward.2} parent=5 // pred_check_branch
      %819 = sbr.rel (%p817) target = $region56
    $region55: #{combine_layers_forward.2} parent=5 // pred_region
      %s820 = ssub.s32 %s13, 2
      // Predicated region
      $region57: #{combine_layers_forward.2} parent=55 // pred_check
        %p821 = pneg %p194
      $region58: #{combine_layers_forward.2} parent=55 // pred_check_branch
        %823 = sbr.rel (%p821) target = $region60
      $region59: #{combine_layers_forward.2} parent=55 // pred_region
        %p824 = scmp.lt.s32.totalorder %s19, 1
        %s825 = scalar_select %p824, %s19, 1
        %s826 = smul.addr %s825, 4
        %s827 = smul.addr %s826, 4
        %s828 = scalar_lea.vmem %s7, %s827
      $region60: #{combine_layers_forward.2} parent=55 // pred_fallthru
        _
    $region56: #{combine_layers_forward.2} parent=5 // pred_fallthru
      _
  $region6: #{combine_layers_forward.2} parent=0 // loop_footer
    %s17 = sadd.s32 1, %s13
  $region7: #{combine_layers_forward.2} parent=0 // loop_footer_branch
    %12 = sbr.rel target = $region3
  $region8: #{combine_layers_forward.2} parent=0 // loop_exit
    _

// kernel: combine_layers_forward.3
$region0: #{combine_layers_forward.3}
  #allocation0 [shape = 'u32[]', space=smem, size = 0x4, offset = 0x4, fixed_abs, tag = 'smem constant byte address 0x4 - core index']
  #allocation1 [shape = 'u32[144,128]{1,0:T(1,128)}', space=vmem, size = 0x12000, scoped, tag = 'internal scratch']
  %s0 = inlined_call_operand.vmem [shape: bf16[2,32,256], index: 0, kind: input, shape index: {}]
  %s1 = inlined_call_operand.vmem [shape: bf16[2,16,256], index: 1, kind: input, shape index: {}]
  %s2 = inlined_call_operand.vmem [shape: bf16[32,16], index: 2, kind: input, shape index: {}]
  %s3 = inlined_call_operand.vmem [shape: f32[32,1], index: 3, kind: input, shape index: {}]
  %s4 = inlined_call_operand.vmem [shape: f32[32,1], index: 4, kind: input, shape index: {}]
  %s5 = inlined_call_operand.vmem [shape: f32[4,32], index: 5, kind: input, shape index: {}]
  %s6 = inlined_call_operand.vmem [shape: f32[32,4], index: 6, kind: input, shape index: {}]
  %s7 = inlined_call_operand.vmem [shape: bf16[2,32,256], index: 7, kind: output, shape index: {}]
  %s8 = sld [smem:[#allocation0]]
  $region61: #{combine_layers_forward.3} parent=0
    _
  %s10 = ssub.s32 1, %s8
  %s11 = scalar_select 0, %s10, %s8
  loop: start=0, step=1, limit=4
  $region2: #{combine_layers_forward.3} parent=0 // loop_pre_header
    _
  $region3: #{combine_layers_forward.3} parent=0 // loop_header
    %s13 = sphi 0, %s17
    %p14 = scmp.ge.s32.totalorder %s13, 4
    %s23 = sphi 0, %s25
    %s26 = sphi 0, %s23
    %s27 = sphi 0, %s26
    %s43 = sphi 0, %s27
    %s49 = sphi 0, %s51
    %s52 = sphi 0, %s49
    %s53 = sphi 0, %s52
    %s69 = sphi 0, %s53
    %s73 = sphi 0, %s73
    %s75 = sphi 0, %s73
    %s76 = sphi 0, %s75
    %s90 = sphi 0, %s76
    %s94 = sphi 0, %s94
    %s96 = sphi 0, %s94
    %s97 = sphi 0, %s96
    %s111 = sphi 0, %s97
    %s115 = sphi 0, %s115
    %s117 = sphi 0, %s115
    %s118 = sphi 0, %s117
    %s132 = sphi 0, %s118
    %s136 = sphi 0, %s136
    %s138 = sphi 0, %s136
    %s139 = sphi 0, %s138
    %s153 = sphi 0, %s139
    %s157 = sphi 0, %s157
    %s159 = sphi 0, %s157
    %s160 = sphi 0, %s159
    %s174 = sphi 0, %s160
    %s180 = sphi 0, %s182
    %s183 = sphi 0, %s180
    %s184 = sphi 0, %s183
    %s200 = sphi 0, %s184
  $region4: #{combine_layers_forward.3} parent=0 // loop_header_branch
    %16 = sbr.rel (%p14) target = $region8
  $region5: #{combine_layers_forward.3} parent=0 // loop_body
    %s18 = ssub.s32 %s13, 1
    %s19 = ssub.s32 %s13, 2
    %s20 = sadd.s32 %s13, 1
    %s21 = ssub.s32 %s13, %s20
    %p22 = scmp.eq.s32.totalorder %s21, 0
    %s24 = sadd.s32 %s23, 1
    %s25 = scalar_select %p22, %s23, %s24
    %p28 = pneg %p22
    %p29 = scmp.eq.s32.totalorder %s13, 1
    %p30 = por %p28, %p29
    %p31 = scmp.ne.s32.totalorder %s23, %s26
    %p32 = scmp.eq.s32.totalorder %s13, 0
    %p33 = por %p31, %p32
    %p34 = scmp.ne.s32.totalorder %s23, %s26
    %p35 = scmp.eq.s32.totalorder %s18, 1
    %p36 = por %p34, %p35
    %p37 = scmp.ne.s32.totalorder %s26, %s27
    %p38 = scmp.eq.s32.totalorder %s18, 0
    %p39 = por %p37, %p38
    %p40 = scmp.ne.s32.totalorder %s26, %s27
    %p41 = scmp.eq.s32.totalorder %s19, 1
    %p42 = por %p40, %p41
    %p44 = scmp.ne.s32.totalorder %s27, %s43
    %p45 = scmp.eq.s32.totalorder %s19, 0
    %p46 = por %p44, %p45
    %s47 = ssub.s32 %s13, %s20
    %p48 = scmp.eq.s32.totalorder %s47, 0
    %s50 = sadd.s32 %s49, 1
    %s51 = scalar_select %p48, %s49, %s50
    %p54 = pneg %p48
    %p55 = scmp.eq.s32.totalorder %s13, 1
    %p56 = por %p54, %p55
    %p57 = scmp.ne.s32.totalorder %s49, %s52
    %p58 = scmp.eq.s32.totalorder %s13, 0
    %p59 = por %p57, %p58
    %p60 = scmp.ne.s32.totalorder %s49, %s52
    %p61 = scmp.eq.s32.totalorder %s18, 1
    %p62 = por %p60, %p61
    %p63 = scmp.ne.s32.totalorder %s52, %s53
    %p64 = scmp.eq.s32.totalorder %s18, 0
    %p65 = por %p63, %p64
    %p66 = scmp.ne.s32.totalorder %s52, %s53
    %p67 = scmp.eq.s32.totalorder %s19, 1
    %p68 = por %p66, %p67
    %p70 = scmp.ne.s32.totalorder %s53, %s69
    %p71 = scmp.eq.s32.totalorder %s19, 0
    %p72 = por %p70, %p71
    %s74 = sadd.s32 %s73, 1
    %p77 = scmp.eq.s32.totalorder %s13, 1
    %p78 = scmp.ne.s32.totalorder %s73, %s75
    %p79 = scmp.eq.s32.totalorder %s13, 0
    %p80 = por %p78, %p79
    %p81 = scmp.ne.s32.totalorder %s73, %s75
    %p82 = scmp.eq.s32.totalorder %s18, 1
    %p83 = por %p81, %p82
    %p84 = scmp.ne.s32.totalorder %s75, %s76
    %p85 = scmp.eq.s32.totalorder %s18, 0
    %p86 = por %p84, %p85
    %p87 = scmp.ne.s32.totalorder %s75, %s76
    %p88 = scmp.eq.s32.totalorder %s19, 1
    %p89 = por %p87, %p88
    %p91 = scmp.ne.s32.totalorder %s76, %s90
    %p92 = scmp.eq.s32.totalorder %s19, 0
    %p93 = por %p91, %p92
    %s95 = sadd.s32 %s94, 1
    %p98 = scmp.eq.s32.totalorder %s13, 1
    %p99 = scmp.ne.s32.totalorder %s94, %s96
    %p100 = scmp.eq.s32.totalorder %s13, 0
    %p101 = por %p99, %p100
    %p102 = scmp.ne.s32.totalorder %s94, %s96
    %p103 = scmp.eq.s32.totalorder %s18, 1
    %p104 = por %p102, %p103
    %p105 = scmp.ne.s32.totalorder %s96, %s97
    %p106 = scmp.eq.s32.totalorder %s18, 0
    %p107 = por %p105, %p106
    %p108 = scmp.ne.s32.totalorder %s96, %s97
    %p109 = scmp.eq.s32.totalorder %s19, 1
    %p110 = por %p108, %p109
    %p112 = scmp.ne.s32.totalorder %s97, %s111
    %p113 = scmp.eq.s32.totalorder %s19, 0
    %p114 = por %p112, %p113
    %s116 = sadd.s32 %s115, 1
    %p119 = scmp.eq.s32.totalorder %s13, 1
    %p120 = scmp.ne.s32.totalorder %s115, %s117
    %p121 = scmp.eq.s32.totalorder %s13, 0
    %p122 = por %p120, %p121
    %p123 = scmp.ne.s32.totalorder %s115, %s117
    %p124 = scmp.eq.s32.totalorder %s18, 1
    %p125 = por %p123, %p124
    %p126 = scmp.ne.s32.totalorder %s117, %s118
    %p127 = scmp.eq.s32.totalorder %s18, 0
    %p128 = por %p126, %p127
    %p129 = scmp.ne.s32.totalorder %s117, %s118
    %p130 = scmp.eq.s32.totalorder %s19, 1
    %p131 = por %p129, %p130
    %p133 = scmp.ne.s32.totalorder %s118, %s132
    %p134 = scmp.eq.s32.totalorder %s19, 0
    %p135 = por %p133, %p134
    %s137 = sadd.s32 %s136, 1
    %p140 = scmp.eq.s32.totalorder %s13, 1
    %p141 = scmp.ne.s32.totalorder %s136, %s138
    %p142 = scmp.eq.s32.totalorder %s13, 0
    %p143 = por %p141, %p142
    %p144 = scmp.ne.s32.totalorder %s136, %s138
    %p145 = scmp.eq.s32.totalorder %s18, 1
    %p146 = por %p144, %p145
    %p147 = scmp.ne.s32.totalorder %s138, %s139
    %p148 = scmp.eq.s32.totalorder %s18, 0
    %p149 = por %p147, %p148
    %p150 = scmp.ne.s32.totalorder %s138, %s139
    %p151 = scmp.eq.s32.totalorder %s19, 1
    %p152 = por %p150, %p151
    %p154 = scmp.ne.s32.totalorder %s139, %s153
    %p155 = scmp.eq.s32.totalorder %s19, 0
    %p156 = por %p154, %p155
    %s158 = sadd.s32 %s157, 1
    %p161 = scmp.eq.s32.totalorder %s13, 1
    %p162 = scmp.ne.s32.totalorder %s157, %s159
    %p163 = scmp.eq.s32.totalorder %s13, 0
    %p164 = por %p162, %p163
    %p165 = scmp.ne.s32.totalorder %s157, %s159
    %p166 = scmp.eq.s32.totalorder %s18, 1
    %p167 = por %p165, %p166
    %p168 = scmp.ne.s32.totalorder %s159, %s160
    %p169 = scmp.eq.s32.totalorder %s18, 0
    %p170 = por %p168, %p169
    %p171 = scmp.ne.s32.totalorder %s159, %s160
    %p172 = scmp.eq.s32.totalorder %s19, 1
    %p173 = por %p171, %p172
    %p175 = scmp.ne.s32.totalorder %s160, %s174
    %p176 = scmp.eq.s32.totalorder %s19, 0
    %p177 = por %p175, %p176
    %s178 = ssub.s32 %s13, %s20
    %p179 = scmp.eq.s32.totalorder %s178, 0
    %s181 = sadd.s32 %s180, 1
    %s182 = scalar_select %p179, %s180, %s181
    %p185 = pneg %p179
    %p186 = scmp.eq.s32.totalorder %s13, 1
    %p187 = por %p185, %p186
    %p188 = scmp.ne.s32.totalorder %s180, %s183
    %p189 = scmp.eq.s32.totalorder %s13, 0
    %p190 = por %p188, %p189
    %p191 = scmp.ne.s32.totalorder %s180, %s183
    %p192 = scmp.eq.s32.totalorder %s18, 1
    %p193 = por %p191, %p192
    %p194 = scmp.ne.s32.totalorder %s183, %s184
    %p195 = scmp.eq.s32.totalorder %s18, 0
    %p196 = por %p194, %p195
    %p197 = scmp.ne.s32.totalorder %s183, %s184
    %p198 = scmp.eq.s32.totalorder %s19, 1
    %p199 = por %p197, %p198
    %p201 = scmp.ne.s32.totalorder %s184, %s200
    %p202 = scmp.eq.s32.totalorder %s19, 0
    %p203 = por %p201, %p202
    %p204 = scmp.le.s32.totalorder 1, %s13
    %p205 = scmp.lt.s32.totalorder %s13, 3
    %p206 = pnand %p204, %p205
    %p207 = pneg %p206
    // Predicated region
    $region9: #{combine_layers_forward.3} parent=5 // pred_check
      _
    $region10: #{combine_layers_forward.3} parent=5 // pred_check_branch
      %209 = sbr.rel (%p206) target = $region12
    $region11: #{combine_layers_forward.3} parent=5 // pred_region
      %s210 = ssub.s32 %s13, 1
      // Predicated region
      $region13: #{combine_layers_forward.3} parent=11 // pred_check
        %p211 = pneg %p86
      $region14: #{combine_layers_forward.3} parent=11 // pred_check_branch
        %213 = sbr.rel (%p211) target = $region16
      $region15: #{combine_layers_forward.3} parent=11 // pred_region
        _
      $region16: #{combine_layers_forward.3} parent=11 // pred_fallthru
        _
      // Predicated region
      $region17: #{combine_layers_forward.3} parent=11 // pred_check
        %p214 = pneg %p107
      $region18: #{combine_layers_forward.3} parent=11 // pred_check_branch
        %216 = sbr.rel (%p214) target = $region20
      $region19: #{combine_layers_forward.3} parent=11 // pred_region
        _
      $region20: #{combine_layers_forward.3} parent=11 // pred_fallthru
        _
      // Predicated region
      $region21: #{combine_layers_forward.3} parent=11 // pred_check
        %p217 = pneg %p128
      $region22: #{combine_layers_forward.3} parent=11 // pred_check_branch
        %219 = sbr.rel (%p217) target = $region24
      $region23: #{combine_layers_forward.3} parent=11 // pred_region
        _
      $region24: #{combine_layers_forward.3} parent=11 // pred_fallthru
        _
      // Predicated region
      $region25: #{combine_layers_forward.3} parent=11 // pred_check
        %p220 = pneg %p149
      $region26: #{combine_layers_forward.3} parent=11 // pred_check_branch
        %222 = sbr.rel (%p220) target = $region28
      $region27: #{combine_layers_forward.3} parent=11 // pred_region
        _
      $region28: #{combine_layers_forward.3} parent=11 // pred_fallthru
        _
      // Predicated region
      $region29: #{combine_layers_forward.3} parent=11 // pred_check
        %p223 = pneg %p170
      $region30: #{combine_layers_forward.3} parent=11 // pred_check_branch
        %225 = sbr.rel (%p223) target = $region32
      $region31: #{combine_layers_forward.3} parent=11 // pred_region
        _
      $region32: #{combine_layers_forward.3} parent=11 // pred_fallthru
        _
    $region12: #{combine_layers_forward.3} parent=5 // pred_fallthru
      _
    %p226 = scmp.lt.s32.totalorder %s13, 2
    // Predicated region
    $region33: #{combine_layers_forward.3} parent=5 // pred_check
      %p227 = pneg %p226
    $region34: #{combine_layers_forward.3} parent=5 // pred_check_branch
      %229 = sbr.rel (%p227) target = $region36
    $region35: #{combine_layers_forward.3} parent=5 // pred_region
      // Predicated region
      $region37: #{combine_layers_forward.3} parent=35 // pred_check
        %p230 = pneg %p33
      $region38: #{combine_layers_forward.3} parent=35 // pred_check_branch
        %232 = sbr.rel (%p230) target = $region40
      $region39: #{combine_layers_forward.3} parent=35 // pred_region
        %p233 = scmp.lt.s32.totalorder %s13, 1
        %s234 = scalar_select %p233, %s13, 1
        %s235 = smul.addr %s234, 8
        %s236 = smul.addr %s235, 4
        %s237 = scalar_lea.vmem %s0, %s236
      $region40: #{combine_layers_forward.3} parent=35 // pred_fallthru
        _
      // Predicated region
      $region41: #{combine_layers_forward.3} parent=35 // pred_check
        %p238 = pneg %p59
      $region42: #{combine_layers_forward.3} parent=35 // pred_check_branch
        %240 = sbr.rel (%p238) target = $region44
      $region43: #{combine_layers_forward.3} parent=35 // pred_region
        %p241 = scmp.lt.s32.totalorder %s13, 1
        %s242 = scalar_select %p241, %s13, 1
        %s243 = smul.addr %s242, 4
        %s244 = smul.addr %s243, 4
        %s245 = scalar_lea.vmem %s1, %s244
      $region44: #{combine_layers_forward.3} parent=35 // pred_fallthru
        _
    $region36: #{combine_layers_forward.3} parent=5 // pred_fallthru
      _
    %p246 = scmp.le.s32.totalorder 1, %s13
    %p247 = scmp.lt.s32.totalorder %s13, 3
    %p248 = pnand %p246, %p247
    %p249 = pneg %p248
    // Predicated region
    $region45: #{combine_layers_forward.3} parent=5 // pred_check
      _
    $region46: #{combine_layers_forward.3} parent=5 // pred_check_branch
      %251 = sbr.rel (%p248) target = $region48
    $region47: #{combine_layers_forward.3} parent=5 // pred_region
      %s252 = ssub.s32 %s13, 1
      %p253 = scmp.lt.s32.totalorder %s18, 1
      %s254 = scalar_select %p253, %s18, 1
      %s255 = smul.addr %s254, 8
      %s256 = smul.addr %s255, 4
      %s257 = scalar_lea.vmem %s0, %s256
      %p258 = pneg %p39
      %p259 = pneg %p36
      %p260 = scmp.lt.s32.totalorder %s18, 1
      %s261 = scalar_select %p260, %s18, 1
      %s262 = smul.addr %s261, 4
      %s263 = smul.addr %s262, 4
      %s264 = scalar_lea.vmem %s1, %s263
      %p265 = pneg %p65
      %p266 = pneg %p62
      %p267 = pneg %p86
      %p268 = pneg %p83
      %p269 = pneg %p107
      %p270 = pneg %p104
      %p271 = pneg %p128
      %p272 = pneg %p125
      %p273 = pneg %p149
      %p274 = pneg %p146
      %p275 = pneg %p170
      %p276 = pneg %p167
      %p277 = pneg %p196
      %p278 = pneg %p193
      %p279 = scmp.lt.s32.totalorder %s18, 1
      %s280 = scalar_select %p279, %s18, 1
      %s281 = smul.addr %s280, 8
      %s282 = smul.addr %s281, 4
      %s283 = scalar_lea.vmem %s7, %s282
      %p284 = scmp.lt.s32.totalorder %s18, 1
      %s285 = scalar_select %p284, %s18, 1
      %s286 = smul.addr %s285, 8
      %s287 = smul.addr %s286, 4
      %s288 = scalar_lea.vmem %s0, %s287
      %p289 = scmp.lt.s32.totalorder %s18, 1
      %s290 = scalar_select %p289, %s18, 1
      %s291 = smul.addr %s290, 4
      %s292 = smul.addr %s291, 4
      %s293 = scalar_lea.vmem %s1, %s292
      %p294 = scmp.lt.s32.totalorder %s18, 1
      %s295 = scalar_select %p294, %s18, 1
      %s296 = smul.addr %s295, 8
      %s297 = smul.addr %s296, 4
      %s298 = scalar_lea.vmem %s7, %s297
      %v300 = vld [vmem:[%s2] sm:$0xf]
      %v301 = vld [vmem:[%s2 + $0x4] sm:$0xf]
      %v302 = vld [vmem:[%s2 + $0x8] sm:$0xf]
      %v303 = vld [vmem:[%s2 + $0xc] sm:$0xf]
      %v304 = vld [vmem:[%s293] sm:$0xff]
      %v305 = vld [vmem:[%s293 + $0x8] sm:$0xff]
      %v306 = vld [vmem:[%s288] sm:$0xff]
      %v307 = vld [vmem:[%s288 + $0x8] sm:$0xff]
      %v308 = vld [vmem:[%s288 + $0x10] sm:$0xff]
      %v309 = vld [vmem:[%s288 + $0x18] sm:$0xff]
      %v310 = vunpack.c.l.bf16 %v306
      %v311 = vunpack.c.h.bf16 %v306
      %v312 = vunpack.c.l.bf16 %v307
      %v313 = vunpack.c.h.bf16 %v307
      %v314 = vunpack.c.l.bf16 %v308
      %v315 = vunpack.c.h.bf16 %v308
      %v316 = vunpack.c.l.bf16 %v309
      %v317 = vunpack.c.h.bf16 %v309
      %v322 = vunpack.c.l.b16 %v300
      %v323 = vunpack.c.l.b16 %v301
      %v324 = vunpack.c.l.b16 %v302
      %v325 = vunpack.c.l.b16 %v303
      %v326 = vpack.c.b16 %v323, %v322
      %v327 = vpack.c.b16 %v325, %v324
      %v330 = vunpack.c.l.b16 %v304
      %v331 = vunpack.c.h.b16 %v304
      %v332 = vunpack.c.l.b16 %v305
      %v333 = vunpack.c.h.b16 %v305
      %v334 = vpack.c.b16 %v332, %v330
      %v335 = vpack.c.b16 %v333, %v331
      %vm338 = vcmask 130048
      %v340 = vsel %vm338, %v326, 0
      %v343 = vsel %vm338, %v327, 0
      %345 = vmatprep.subr.bf16.mxu0 0
      %346 = vmatpush1.bf16.msra.mxu0 0
      %347 = vmatprep.subr.bf16.mxu0 0
      %348 = vmatpush1.bf16.msra.mxu0 0
      %349 = vmatprep.subr.bf16.mxu0 0
      %350 = vmatpush1.bf16.msra.mxu0 0
      %351 = vmatprep.subr.bf16.mxu0 0
      %352 = vmatpush1.bf16.msra.mxu0 0
      %353 = vmatprep.subr.bf16.mxu0 0
      %354 = vmatpush1.bf16.msra.mxu0 0
      %355 = vmatprep.subr.bf16.mxu0 0
      %356 = vmatpush1.bf16.msra.mxu0 0
      %357 = vmatprep.subr.bf16.mxu0 0
      %358 = vmatpush1.bf16.msra.mxu0 0
      %359 = vmatprep.subr.bf16.mxu0 %v335
      %360 = vmatpush1.bf16.msra.mxu0 %v334
      %361 = vmatprep.subr.bf16.mxu0 0
      %362 = vmatpush2.bf16.msra.mxu0 0
      %363 = vmatprep.subr.bf16.mxu0 0
      %364 = vmatpush2.bf16.msra.mxu0 0
      %365 = vmatprep.subr.bf16.mxu0 0
      %366 = vmatpush2.bf16.msra.mxu0 0
      %367 = vmatprep.subr.bf16.mxu0 0
      %368 = vmatpush2.bf16.msra.mxu0 0
      %369 = vmatprep.subr.bf16.mxu0 0
      %370 = vmatpush2.bf16.msra.mxu0 0
      %371 = vmatprep.subr.bf16.mxu0 0
      %372 = vmatpush2.bf16.msra.mxu0 0
      %373 = vmatprep.subr.bf16.mxu0 0
      %374 = vmatpush2.bf16.msra.mxu0 0
      %375 = vmatprep.subr.bf16.mxu0 0
      %376 = vmatpush2.bf16.msra.mxu0 0
      %377 = vmatprep.mubr.bf16.mxu0 0
      %378 = vmatmul.mubr.bf16.gmra.mxu0 %v340
      %v379 = vpop.f32.mrf.mxu0
      %v380 = vadd.f32 %v310, %v379
      %v381 = vpop.f32.mrf.mxu0
      %v382 = vadd.f32 %v311, %v381
      %v383 = vpop.f32.mrf.mxu0
      %v384 = vadd.f32 %v312, %v383
      %v385 = vpop.f32.mrf.mxu0
      %v386 = vadd.f32 %v313, %v385
      %387 = vmatprep.mubr.bf16.mxu0 0
      %388 = vmatmul.mubr.bf16.gmra.mxu0 %v343
      %v389 = vpop.f32.mrf.mxu0
      %v390 = vadd.f32 %v314, %v389
      %v391 = vpop.f32.mrf.mxu0
      %v392 = vadd.f32 %v315, %v391
      %v393 = vpop.f32.mrf.mxu0
      %v394 = vadd.f32 %v316, %v393
      %v395 = vpop.f32.mrf.mxu0
      %v396 = vadd.f32 %v317, %v395
      %397 = vdwg.mxu0
      %v398 = vld [vmem:[%s5] sm:$0xf]
      %v399 = vld [vmem:[%s6] sm:$0xff]
      %v400 = vld [vmem:[%s6 + $0x8] sm:$0xff]
      %v401 = vld [vmem:[%s6 + $0x10] sm:$0xff]
      %v402 = vld [vmem:[%s6 + $0x18] sm:$0xff]
      %v403 = vld [vmem:[%s3] sm:$0xff]
      %v404 = vld [vmem:[%s3 + $0x8] sm:$0xff]
      %v405 = vld [vmem:[%s3 + $0x10] sm:$0xff]
      %v406 = vld [vmem:[%s3 + $0x18] sm:$0xff]
      %v407 = vld [vmem:[%s4] sm:$0xff]
      %v408 = vld [vmem:[%s4 + $0x8] sm:$0xff]
      %v409 = vld [vmem:[%s4 + $0x10] sm:$0xff]
      %v410 = vld [vmem:[%s4 + $0x18] sm:$0xff]
      %v411 = vadd.f32 %v380, %v382
      %412 = vadd.xlane.f32.xlu0 %v411
      %v413 = vpop.xlane.xlu0 %412
      %v414 = vadd.f32 %v384, %v386
      %415 = vadd.xlane.f32.xlu0 %v414
      %v416 = vpop.xlane.xlu0 %415
      %v417 = vadd.f32 %v390, %v392
      %418 = vadd.xlane.f32.xlu0 %v417
      %v419 = vpop.xlane.xlu0 %418
      %v420 = vadd.f32 %v394, %v396
      %421 = vadd.xlane.f32.xlu0 %v420
      %v422 = vpop.xlane.xlu0 %421
      %v423 = vmul.f32 %v380, %v380
      %v424 = vmul.f32 %v382, %v382
      %v425 = vmul.f32 %v384, %v384
      %v426 = vmul.f32 %v386, %v386
      %v427 = vmul.f32 %v390, %v390
      %v428 = vmul.f32 %v392, %v392
      %v429 = vmul.f32 %v394, %v394
      %v430 = vmul.f32 %v396, %v396
      %v431 = vadd.f32 %v423, %v424
      %432 = vadd.xlane.f32.xlu0 %v431
      %v433 = vpop.xlane.xlu0 %432
      %v434 = vadd.f32 %v425, %v426
      %435 = vadd.xlane.f32.xlu0 %v434
      %v436 = vpop.xlane.xlu0 %435
      %v437 = vadd.f32 %v427, %v428
      %438 = vadd.xlane.f32.xlu0 %v437
      %v439 = vpop.xlane.xlu0 %438
      %v440 = vadd.f32 %v429, %v430
      %441 = vadd.xlane.f32.xlu0 %v440
      %v442 = vpop.xlane.xlu0 %441
      %vm443 = vcmask 261120
      %v445 = vsel %vm443, %v398, 0
      %447 = vmatprep.subr.mxu0 0.0
      %448 = vmatpush1.msra.mxu0 0.0
      %449 = vmatprep.subr.mxu0 0.0
      %450 = vmatpush1.msra.mxu0 0.0
      %451 = vmatprep.subr.mxu0 0.0
      %452 = vmatpush1.msra.mxu0 0.0
      %453 = vmatprep.subr.mxu0 0.0
      %454 = vmatpush1.msra.mxu0 0.0
      %455 = vmatprep.subr.mxu0 0.0
      %456 = vmatpush1.msra.mxu0 0.0
      %457 = vmatprep.subr.mxu0 0.0
      %458 = vmatpush1.msra.mxu0 0.0
      %459 = vmatprep.subr.mxu0 0.0
      %460 = vmatpush1.msra.mxu0 0.0
      %461 = vmatprep.subr.mxu0 0.0
      %462 = vmatpush1.msra.mxu0 0.0
      %463 = vmatprep.subr.mxu0 0.0
      %464 = vmatpush1.msra.mxu0 0.0
      %465 = vmatprep.subr.mxu0 0.0
      %466 = vmatpush1.msra.mxu0 0.0
      %467 = vmatprep.subr.mxu0 0.0
      %468 = vmatpush1.msra.mxu0 0.0
      %469 = vmatprep.subr.mxu0 0.0
      %470 = vmatpush1.msra.mxu0 0.0
      %471 = vmatprep.subr.mxu0 0.0
      %472 = vmatpush1.msra.mxu0 %v422
      %473 = vmatprep.subr.mxu0 0.0
      %474 = vmatpush1.msra.mxu0 %v419
      %475 = vmatprep.subr.mxu0 0.0
      %476 = vmatpush1.msra.mxu0 %v416
      %477 = vmatprep.subr.mxu0 0.0
      %478 = vmatpush1.msra.mxu0 %v413
      %479 = vmatprep.subr.mxu0 0.0
      %480 = vmatpush2.msra.mxu0 0.0
      %481 = vmatprep.subr.mxu0 0.0
      %482 = vmatpush2.msra.mxu0 0.0
      %483 = vmatprep.subr.mxu0 0.0
      %484 = vmatpush2.msra.mxu0 0.0
      %485 = vmatprep.subr.mxu0 0.0
      %486 = vmatpush2.msra.mxu0 0.0
      %487 = vmatprep.subr.mxu0 0.0
      %488 = vmatpush2.msra.mxu0 0.0
      %489 = vmatprep.subr.mxu0 0.0
      %490 = vmatpush2.msra.mxu0 0.0
      %491 = vmatprep.subr.mxu0 0.0
      %492 = vmatpush2.msra.mxu0 0.0
      %493 = vmatprep.subr.mxu0 0.0
      %494 = vmatpush2.msra.mxu0 0.0
      %495 = vmatprep.subr.mxu0 0.0
      %496 = vmatpush2.msra.mxu0 0.0
      %497 = vmatprep.subr.mxu0 0.0
      %498 = vmatpush2.msra.mxu0 0.0
      %499 = vmatprep.subr.mxu0 0.0
      %500 = vmatpush2.msra.mxu0 0.0
      %501 = vmatprep.subr.mxu0 0.0
      %502 = vmatpush2.msra.mxu0 0.0
      %503 = vmatprep.subr.mxu0 0.0
      %504 = vmatpush2.msra.mxu0 0.0
      %505 = vmatprep.subr.mxu0 0.0
      %506 = vmatpush2.msra.mxu0 0.0
      %507 = vmatprep.subr.mxu0 0.0
      %508 = vmatpush2.msra.mxu0 0.0
      %509 = vmatprep.subr.mxu0 0.0
      %510 = vmatpush2.msra.mxu0 0.0
      %511 = vmatprep.mubr.f32.mxu0 0.0
      %512 = vmatmul.mubr.f32.gmra.mxu0 %v445
      %v513 = vpop.f32.mrf.mxu0
      %v514 = vadd.f32 0.0, %v513
      %v515 = vpop.f32.mrf.mxu0
      %516 = vdwg.mxu0
      %517 = vmatprep.subr.mxu0 0.0
      %518 = vmatpush1.msra.mxu0 0.0
      %519 = vmatprep.subr.mxu0 0.0
      %520 = vmatpush1.msra.mxu0 0.0
      %521 = vmatprep.subr.mxu0 0.0
      %522 = vmatpush1.msra.mxu0 0.0
      %523 = vmatprep.subr.mxu0 0.0
      %524 = vmatpush1.msra.mxu0 0.0
      %525 = vmatprep.subr.mxu0 0.0
      %526 = vmatpush1.msra.mxu0 0.0
      %527 = vmatprep.subr.mxu0 0.0
      %528 = vmatpush1.msra.mxu0 0.0
      %529 = vmatprep.subr.mxu0 0.0
      %530 = vmatpush1.msra.mxu0 0.0
      %531 = vmatprep.subr.mxu0 0.0
      %532 = vmatpush1.msra.mxu0 0.0
      %533 = vmatprep.subr.mxu0 0.0
      %534 = vmatpush1.msra.mxu0 0.0
      %535 = vmatprep.subr.mxu0 0.0
      %536 = vmatpush1.msra.mxu0 0.0
      %537 = vmatprep.subr.mxu0 0.0
      %538 = vmatpush1.msra.mxu0 0.0
      %539 = vmatprep.subr.mxu0 0.0
      %540 = vmatpush1.msra.mxu0 0.0
      %541 = vmatprep.subr.mxu0 0.0
      %542 = vmatpush1.msra.mxu0 %v442
      %543 = vmatprep.subr.mxu0 0.0
      %544 = vmatpush1.msra.mxu0 %v439
      %545 = vmatprep.subr.mxu0 0.0
      %546 = vmatpush1.msra.mxu0 %v436
      %547 = vmatprep.subr.mxu0 0.0
      %548 = vmatpush1.msra.mxu0 %v433
      %549 = vmatprep.subr.mxu0 0.0
      %550 = vmatpush2.msra.mxu0 0.0
      %551 = vmatprep.subr.mxu0 0.0
      %552 = vmatpush2.msra.mxu0 0.0
      %553 = vmatprep.subr.mxu0 0.0
      %554 = vmatpush2.msra.mxu0 0.0
      %555 = vmatprep.subr.mxu0 0.0
      %556 = vmatpush2.msra.mxu0 0.0
      %557 = vmatprep.subr.mxu0 0.0
      %558 = vmatpush2.msra.mxu0 0.0
      %559 = vmatprep.subr.mxu0 0.0
      %560 = vmatpush2.msra.mxu0 0.0
      %561 = vmatprep.subr.mxu0 0.0
      %562 = vmatpush2.msra.mxu0 0.0
      %563 = vmatprep.subr.mxu0 0.0
      %564 = vmatpush2.msra.mxu0 0.0
      %565 = vmatprep.subr.mxu0 0.0
      %566 = vmatpush2.msra.mxu0 0.0
      %567 = vmatprep.subr.mxu0 0.0
      %568 = vmatpush2.msra.mxu0 0.0
      %569 = vmatprep.subr.mxu0 0.0
      %570 = vmatpush2.msra.mxu0 0.0
      %571 = vmatprep.subr.mxu0 0.0
      %572 = vmatpush2.msra.mxu0 0.0
      %573 = vmatprep.subr.mxu0 0.0
      %574 = vmatpush2.msra.mxu0 0.0
      %575 = vmatprep.subr.mxu0 0.0
      %576 = vmatpush2.msra.mxu0 0.0
      %577 = vmatprep.subr.mxu0 0.0
      %578 = vmatpush2.msra.mxu0 0.0
      %579 = vmatprep.subr.mxu0 0.0
      %580 = vmatpush2.msra.mxu0 0.0
      %581 = vmatprep.mubr.f32.mxu0 0.0
      %582 = vmatmul.mubr.f32.gmra.mxu0 %v445
      %v583 = vpop.f32.mrf.mxu0
      %v584 = vadd.f32 0.0, %v583
      %v585 = vpop.f32.mrf.mxu0
      %586 = vdwg.mxu0
      %v587 = vrcp.pop 2048.0
      %v588 = vmul.f32 %v514, %v587
      %v589 = vmul.f32 %v584, %v587
      %v590 = vmul.f32 %v588, %v588
      %v591 = vsub.f32 %v589, %v590
      %v592 = vadd.f32 %v591, 1e-05
      %v593 = vrsqrt.pop %v592
      %vm594 = vcmask 31744
      %v596 = vsel %vm594, %v399, 0
      %v599 = vsel %vm594, %v400, 0
      %v602 = vsel %vm594, %v401, 0
      %v605 = vsel %vm594, %v402, 0
      %vm607 = vcmask 1043456
      %v609 = vsel %vm607, %v588, 0
      %611 = vmatprep.subr.mxu0 0.0
      %612 = vmatpush1.msra.mxu0 0.0
      %613 = vmatprep.subr.mxu0 0.0
      %614 = vmatpush1.msra.mxu0 0.0
      %615 = vmatprep.subr.mxu0 0.0
      %616 = vmatpush1.msra.mxu0 0.0
      %617 = vmatprep.subr.mxu0 0.0
      %618 = vmatpush1.msra.mxu0 0.0
      %619 = vmatprep.subr.mxu0 0.0
      %620 = vmatpush1.msra.mxu0 0.0
      %621 = vmatprep.subr.mxu0 0.0
      %622 = vmatpush1.msra.mxu0 0.0
      %623 = vmatprep.subr.mxu0 0.0
      %624 = vmatpush1.msra.mxu0 0.0
      %625 = vmatprep.subr.mxu0 0.0
      %626 = vmatpush1.msra.mxu0 0.0
      %627 = vmatprep.subr.mxu0 0.0
      %628 = vmatpush1.msra.mxu0 0.0
      %629 = vmatprep.subr.mxu0 0.0
      %630 = vmatpush1.msra.mxu0 0.0
      %631 = vmatprep.subr.mxu0 0.0
      %632 = vmatpush1.msra.mxu0 0.0
      %633 = vmatprep.subr.mxu0 0.0
      %634 = vmatpush1.msra.mxu0 0.0
      %635 = vmatprep.subr.mxu0 0.0
      %636 = vmatpush1.msra.mxu0 0.0
      %637 = vmatprep.subr.mxu0 0.0
      %638 = vmatpush1.msra.mxu0 0.0
      %639 = vmatprep.subr.mxu0 0.0
      %640 = vmatpush1.msra.mxu0 0.0
      %641 = vmatprep.subr.mxu0 0.0
      %642 = vmatpush1.msra.mxu0 %v609
      %643 = vmatprep.subr.mxu0 0.0
      %644 = vmatpush2.msra.mxu0 0.0
      %645 = vmatprep.subr.mxu0 0.0
      %646 = vmatpush2.msra.mxu0 0.0
      %647 = vmatprep.subr.mxu0 0.0
      %648 = vmatpush2.msra.mxu0 0.0
      %649 = vmatprep.subr.mxu0 0.0
      %650 = vmatpush2.msra.mxu0 0.0
      %651 = vmatprep.subr.mxu0 0.0
      %652 = vmatpush2.msra.mxu0 0.0
      %653 = vmatprep.subr.mxu0 0.0
      %654 = vmatpush2.msra.mxu0 0.0
      %655 = vmatprep.subr.mxu0 0.0
      %656 = vmatpush2.msra.mxu0 0.0
      %657 = vmatprep.subr.mxu0 0.0
      %658 = vmatpush2.msra.mxu0 0.0
      %659 = vmatprep.subr.mxu0 0.0
      %660 = vmatpush2.msra.mxu0 0.0
      %661 = vmatprep.subr.mxu0 0.0
      %662 = vmatpush2.msra.mxu0 0.0
      %663 = vmatprep.subr.mxu0 0.0
      %664 = vmatpush2.msra.mxu0 0.0
      %665 = vmatprep.subr.mxu0 0.0
      %666 = vmatpush2.msra.mxu0 0.0
      %667 = vmatprep.subr.mxu0 0.0
      %668 = vmatpush2.msra.mxu0 0.0
      %669 = vmatprep.subr.mxu0 0.0
      %670 = vmatpush2.msra.mxu0 0.0
      %671 = vmatprep.subr.mxu0 0.0
      %672 = vmatpush2.msra.mxu0 0.0
      %673 = vmatprep.subr.mxu0 0.0
      %674 = vmatpush2.msra.mxu0 0.0
      %675 = vmatprep.mubr.f32.mxu0 0.0
      %676 = vmatmul.mubr.f32.gmra.mxu0 %v596
      %v677 = vpop.f32.mrf.mxu0
      %v678 = vadd.f32 0.0, %v677
      %v679 = vpop.f32.mrf.mxu0
      %680 = vmatprep.mubr.f32.mxu0 0.0
      %681 = vmatmul.mubr.f32.gmra.mxu0 %v599
      %v682 = vpop.f32.mrf.mxu0
      %v683 = vadd.f32 0.0, %v682
      %v684 = vpop.f32.mrf.mxu0
      %685 = vmatprep.mubr.f32.mxu0 0.0
      %686 = vmatmul.mubr.f32.gmra.mxu0 %v602
      %v687 = vpop.f32.mrf.mxu0
      %v688 = vadd.f32 0.0, %v687
      %v689 = vpop.f32.mrf.mxu0
      %690 = vmatprep.mubr.f32.mxu0 0.0
      %691 = vmatmul.mubr.f32.gmra.mxu0 %v605
      %v692 = vpop.f32.mrf.mxu0
      %v693 = vadd.f32 0.0, %v692
      %v694 = vpop.f32.mrf.mxu0
      %695 = vdwg.mxu0
      %v697 = vsel %vm607, %v593, 0
      %699 = vmatprep.subr.mxu0 0.0
      %700 = vmatpush1.msra.mxu0 0.0
      %701 = vmatprep.subr.mxu0 0.0
      %702 = vmatpush1.msra.mxu0 0.0
      %703 = vmatprep.subr.mxu0 0.0
      %704 = vmatpush1.msra.mxu0 0.0
      %705 = vmatprep.subr.mxu0 0.0
      %706 = vmatpush1.msra.mxu0 0.0
      %707 = vmatprep.subr.mxu0 0.0
      %708 = vmatpush1.msra.mxu0 0.0
      %709 = vmatprep.subr.mxu0 0.0
      %710 = vmatpush1.msra.mxu0 0.0
      %711 = vmatprep.subr.mxu0 0.0
      %712 = vmatpush1.msra.mxu0 0.0
      %713 = vmatprep.subr.mxu0 0.0
      %714 = vmatpush1.msra.mxu0 0.0
      %715 = vmatprep.subr.mxu0 0.0
      %716 = vmatpush1.msra.mxu0 0.0
      %717 = vmatprep.subr.mxu0 0.0
      %718 = vmatpush1.msra.mxu0 0.0
      %719 = vmatprep.subr.mxu0 0.0
      %720 = vmatpush1.msra.mxu0 0.0
      %721 = vmatprep.subr.mxu0 0.0
      %722 = vmatpush1.msra.mxu0 0.0
      %723 = vmatprep.subr.mxu0 0.0
      %724 = vmatpush1.msra.mxu0 0.0
      %725 = vmatprep.subr.mxu0 0.0
      %726 = vmatpush1.msra.mxu0 0.0
      %727 = vmatprep.subr.mxu0 0.0
      %728 = vmatpush1.msra.mxu0 0.0
      %729 = vmatprep.subr.mxu0 0.0
      %730 = vmatpush1.msra.mxu0 %v697
      %731 = vmatprep.subr.mxu0 0.0
      %732 = vmatpush2.msra.mxu0 0.0
      %733 = vmatprep.subr.mxu0 0.0
      %734 = vmatpush2.msra.mxu0 0.0
      %735 = vmatprep.subr.mxu0 0.0
      %736 = vmatpush2.msra.mxu0 0.0
      %737 = vmatprep.subr.mxu0 0.0
      %738 = vmatpush2.msra.mxu0 0.0
      %739 = vmatprep.subr.mxu0 0.0
      %740 = vmatpush2.msra.mxu0 0.0
      %741 = vmatprep.subr.mxu0 0.0
      %742 = vmatpush2.msra.mxu0 0.0
      %743 = vmatprep.subr.mxu0 0.0
      %744 = vmatpush2.msra.mxu0 0.0
      %745 = vmatprep.subr.mxu0 0.0
      %746 = vmatpush2.msra.mxu0 0.0
      %747 = vmatprep.subr.mxu0 0.0
      %748 = vmatpush2.msra.mxu0 0.0
      %749 = vmatprep.subr.mxu0 0.0
      %750 = vmatpush2.msra.mxu0 0.0
      %751 = vmatprep.subr.mxu0 0.0
      %752 = vmatpush2.msra.mxu0 0.0
      %753 = vmatprep.subr.mxu0 0.0
      %754 = vmatpush2.msra.mxu0 0.0
      %755 = vmatprep.subr.mxu0 0.0
      %756 = vmatpush2.msra.mxu0 0.0
      %757 = vmatprep.subr.mxu0 0.0
      %758 = vmatpush2.msra.mxu0 0.0
      %759 = vmatprep.subr.mxu0 0.0
      %760 = vmatpush2.msra.mxu0 0.0
      %761 = vmatprep.subr.mxu0 0.0
      %762 = vmatpush2.msra.mxu0 0.0
      %763 = vmatprep.mubr.f32.mxu0 0.0
      %764 = vmatmul.mubr.f32.gmra.mxu0 %v596
      %v765 = vpop.f32.mrf.mxu0
      %v766 = vadd.f32 0.0, %v765
      %v767 = vpop.f32.mrf.mxu0
      %768 = vmatprep.mubr.f32.mxu0 0.0
      %769 = vmatmul.mubr.f32.gmra.mxu0 %v599
      %v770 = vpop.f32.mrf.mxu0
      %v771 = vadd.f32 0.0, %v770
      %v772 = vpop.f32.mrf.mxu0
      %773 = vmatprep.mubr.f32.mxu0 0.0
      %774 = vmatmul.mubr.f32.gmra.mxu0 %v602
      %v775 = vpop.f32.mrf.mxu0
      %v776 = vadd.f32 0.0, %v775
      %v777 = vpop.f32.mrf.mxu0
      %778 = vmatprep.mubr.f32.mxu0 0.0
      %779 = vmatmul.mubr.f32.gmra.mxu0 %v605
      %v780 = vpop.f32.mrf.mxu0
      %v781 = vadd.f32 0.0, %v780
      %v782 = vpop.f32.mrf.mxu0
      %783 = vdwg.mxu0
      %v784 = vmul.f32 %v766, %v403
      %v785 = vmul.f32 %v771, %v404
      %v786 = vmul.f32 %v776, %v405
      %v787 = vmul.f32 %v781, %v406
      %v788 = vmul.f32 %v678, %v784
      %v789 = vmul.f32 %v683, %v785
      %v790 = vmul.f32 %v688, %v786
      %v791 = vmul.f32 %v693, %v787
      %v792 = vsub.f32 %v407, %v788
      %v793 = vsub.f32 %v408, %v789
      %v794 = vsub.f32 %v409, %v790
      %v795 = vsub.f32 %v410, %v791
      %797 = vset.pattern.permute.xlu0 0
      %798 = vperm.xlu0 %797, %v784
      %v799 = vpop.permute.xlu0 %798
      %802 = vset.pattern.permute.xlu0 0
      %803 = vperm.xlu0 %802, %v785
      %v804 = vpop.permute.xlu0 %803
      %807 = vset.pattern.permute.xlu0 0
      %808 = vperm.xlu0 %807, %v786
      %v809 = vpop.permute.xlu0 %808
      %812 = vset.pattern.permute.xlu0 0
      %813 = vperm.xlu0 %812, %v787
      %v814 = vpop.permute.xlu0 %813
      %v816 = vmul.f32 %v380, %v799
      %v817 = vmul.f32 %v382, %v799
      %v818 = vmul.f32 %v384, %v804
      %v819 = vmul.f32 %v386, %v804
      %v820 = vmul.f32 %v390, %v809
      %v821 = vmul.f32 %v392, %v809
      %v822 = vmul.f32 %v394, %v814
      %v823 = vmul.f32 %v396, %v814
      %825 = vset.pattern.permute.xlu0 0
      %826 = vperm.xlu0 %825, %v792
      %v827 = vpop.permute.xlu0 %826
      %830 = vset.pattern.permute.xlu0 0
      %831 = vperm.xlu0 %830, %v793
      %v832 = vpop.permute.xlu0 %831
      %835 = vset.pattern.permute.xlu0 0
      %836 = vperm.xlu0 %835, %v794
      %v837 = vpop.permute.xlu0 %836
      %840 = vset.pattern.permute.xlu0 0
      %841 = vperm.xlu0 %840, %v795
      %v842 = vpop.permute.xlu0 %841
      %v844 = vadd.f32 %v816, %v827
      %v845 = vadd.f32 %v817, %v827
      %v846 = vadd.f32 %v818, %v832
      %v847 = vadd.f32 %v819, %v832
      %v848 = vadd.f32 %v820, %v837
      %v849 = vadd.f32 %v821, %v837
      %v850 = vadd.f32 %v822, %v842
      %v851 = vadd.f32 %v823, %v842
      %v852 = vpack.c.bf16 %v846, %v844
      %v853 = vpack.c.bf16 %v847, %v845
      %v854 = vpack.c.bf16 %v850, %v848
      %v855 = vpack.c.bf16 %v851, %v849
      %v860 = vunpack.c.l.b16 %v852
      %v861 = vunpack.c.l.b16 %v853
      %v862 = vunpack.c.h.b16 %v852
      %v863 = vunpack.c.h.b16 %v853
      %v864 = vunpack.c.l.b16 %v854
      %v865 = vunpack.c.l.b16 %v855
      %v866 = vunpack.c.h.b16 %v854
      %v867 = vunpack.c.h.b16 %v855
      %v868 = vpack.c.b16 %v861, %v860
      %v869 = vpack.c.b16 %v863, %v862
      %v870 = vpack.c.b16 %v865, %v864
      %v871 = vpack.c.b16 %v867, %v866
      %876 = vst [vmem:[%s298] sm:$0xff] %v868
      %877 = vst [vmem:[%s298 + $0x8] sm:$0xff] %v869
      %878 = vst [vmem:[%s298 + $0x10] sm:$0xff] %v870
      %879 = vst [vmem:[%s298 + $0x18] sm:$0xff] %v871
      %p880 = scmp.lt.s32.totalorder %s18, 1
      %s881 = scalar_select %p880, %s18, 1
      %s882 = smul.addr %s881, 8
      %s883 = smul.addr %s882, 4
      %s884 = scalar_lea.vmem %s7, %s883
      // Predicated region
      $region49: #{combine_layers_forward.3} parent=47 // pred_check
        %p885 = pneg %p193
      $region50: #{combine_layers_forward.3} parent=47 // pred_check_branch
        %887 = sbr.rel (%p885) target = $region52
      $region51: #{combine_layers_forward.3} parent=47 // pred_region
        _
      $region52: #{combine_layers_forward.3} parent=47 // pred_fallthru
        _
    $region48: #{combine_layers_forward.3} parent=5 // pred_fallthru
      _
    %p888 = scmp.le.s32.totalorder 2, %s13
    // Predicated region
    $region53: #{combine_layers_forward.3} parent=5 // pred_check
      %p889 = pneg %p888
    $region54: #{combine_layers_forward.3} parent=5 // pred_check_branch
      %891 = sbr.rel (%p889) target = $region56
    $region55: #{combine_layers_forward.3} parent=5 // pred_region
      %s892 = ssub.s32 %s13, 2
      // Predicated region
      $region57: #{combine_layers_forward.3} parent=55 // pred_check
        %p893 = pneg %p199
      $region58: #{combine_layers_forward.3} parent=55 // pred_check_branch
        %895 = sbr.rel (%p893) target = $region60
      $region59: #{combine_layers_forward.3} parent=55 // pred_region
        %p896 = scmp.lt.s32.totalorder %s19, 1
        %s897 = scalar_select %p896, %s19, 1
        %s898 = smul.addr %s897, 8
        %s899 = smul.addr %s898, 4
        %s900 = scalar_lea.vmem %s7, %s899
      $region60: #{combine_layers_forward.3} parent=55 // pred_fallthru
        _
    $region56: #{combine_layers_forward.3} parent=5 // pred_fallthru
      _
  $region6: #{combine_layers_forward.3} parent=0 // loop_footer
    %s17 = sadd.s32 1, %s13
  $region7: #{combine_layers_forward.3} parent=0 // loop_footer_branch
    %12 = sbr.rel target = $region3
  $region8: #{combine_layers_forward.3} parent=0 // loop_exit
    _

</llo_original>
